<compile_context>
chip_gen: v7x
topology: tpu7x:2x2x1
jax: 0.10.0
libtpu: 0.0.40
codegen_flags: <defaults>
</compile_context>

<pallas_src>
import functools

import jax
import jax.numpy as jnp
from jax.experimental import pallas as pl
from jax.experimental.pallas import tpu as pltpu

LEAKY_SLOPE = 0.01  # PyTorch nn.LeakyReLU default


def _leaky(v):
    return jnp.where(v > 0, v, LEAKY_SLOPE * v)


def _fused_frame_kernel(x_ref, w1_ref, b1_ref, w2_ref, b2_ref, o_ref, *, t1_len, tt, te):
    """One (batch, time-tile) step of the fused conv1 -> conv2 stack.

    x_ref : (4*te, Hi)   phase-split padded input window; row p*te + r holds
                         zero-padded input row 4*(j*tt + r) + p  (left pad = 3).
    w*_ref: (3, Hin, Hout) per-tap weights (tap, in, out).
    b*_ref: (1, Hout)    biases (f32).
    o_ref : (tt, Ho)     final conv2 output rows [j*tt, (j+1)*tt).
    """
    j = pl.program_id(1)
    f32 = jnp.float32

    # Contiguous phase loads (no strided reads, no concatenates).
    p0 = x_ref[0 * te:1 * te, :]          # taps x[4t-3]   (te = tt+8 rows: incl. halo)
    p1 = x_ref[1 * te:2 * te, :]          # taps x[4t-2]
    p2 = x_ref[2 * te:3 * te, :]          # taps x[4t-1]
    p3 = x_ref[3 * te:3 * te + tt, :]     # taps x[4t]
    p4 = x_ref[1:tt + 1, :]               # taps x[4t+1]  == phase0 shifted by one row

    w10, w11, w12 = w1_ref[0], w1_ref[1], w1_ref[2]
    bias1 = b1_ref[...].astype(f32)

    # conv1.  Odd rows  O1[r] = z1[2*(j*tt+r)-1]  for r = 0..te-1 (halo row folded in),
    #         even rows E1[t] = z1[2*(j*tt+t)]    for t = 0..tt-1.
    # The six dots are ordered so consecutive dots share the same RHS tap -> the MXU can
    # reuse the staged RHS; the "+=" chains stay adjacent for v7x MRB accumulation.
    o1 = jnp.dot(p0, w10, preferred_element_type=f32)
    e1 = jnp.dot(p2[0:tt], w10, preferred_element_type=f32)
    o1 += jnp.dot(p1, w11, preferred_element_type=f32)
    e1 += jnp.dot(p3, w11, preferred_element_type=f32)
    o1 += jnp.dot(p2, w12, preferred_element_type=f32)
    e1 += jnp.dot(p4, w12, preferred_element_type=f32)

    o1 = _leaky(o1 + bias1)
    e1 = _leaky(e1 + bias1)

    # conv2 zero-pads ITS input: odd conv1 rows whose global index g is outside
    # [0, t1_len) must read as exact zeros (covers the u=0 look-back and the right edge
    # when t1_len is odd).  Out-of-range EVEN rows are intentionally left unmasked: they
    # are finite (leaky(b1)) and only ever feed final rows >= t2_len, which Pallas drops
    # when writing back the ragged last output block.
    r = jax.lax.broadcasted_iota(jnp.int32, (te, 1), 0)
    g = 2 * (j * tt + r) - 1
    o1 = jnp.where((g >= 0) & (g < t1_len), o1, 0.0)

    # conv2: out[t] = leaky(O1[t] @ W2_0 + E1[t] @ W2_1 + O1[t+1] @ W2_2 + b2).
    # Cast conv1 activations to the MXU dtype immediately so the f32 intermediates die
    # early (accumulation stays f32 via preferred_element_type).
    cdt = w2_ref.dtype
    o1a = o1[0:tt].astype(cdt)
    o1b = o1[1:tt + 1].astype(cdt)        # halo row came from the main odd-phase matmul
    e1c = e1.astype(cdt)
    out = jnp.dot(o1a, w2_ref[0], preferred_element_type=f32)
    out += jnp.dot(e1c, w2_ref[1], preferred_element_type=f32)
    out += jnp.dot(o1b, w2_ref[2], preferred_element_type=f32)
    out = _leaky(out + b2_ref[...].astype(f32))
    o_ref[...] = out.astype(o_ref.dtype)


def frame_embedding_forward(x, params, *, t2_tile=256, compute_dtype=jnp.bfloat16,
                            out_dtype=None, pad_to_lanes=True,
                            single_buffer_weights=False, vmem_limit_bytes=None):
    """Fused FrameEmbedding forward.  x: (B, T, H) channels-last.

    params: {"w1","b1","w2","b2"} in PyTorch Conv1d layout (H_out, H_in, 3) / (H_out,).
    compute_dtype: dtype fed to the MXU (bf16 default; f32 accumulation).  On v5e the
      bf16 path is the only fast path (f32 MXU costs multiple passes).
    t2_tile: final-output rows per grid step.  256 is a good default on v5e/v6e
      (128 MiB VMEM); on v7x (64 MiB VMEM) it is auto-capped to 192 for hidden >= 1024.
    single_buffer_weights: set pipeline_mode=pl.Buffered(1) on the resident weight/bias
      blocks (saves ~12 MiB of VMEM at H=1024 on v7x; off by default).
    """
    B, T, h_in = x.shape
    h_mid = params["w1"].shape[0]
    h_out = params["w2"].shape[0]
    assert params["w1"].shape == (h_mid, h_in, 3)
    assert params["w2"].shape == (h_out, h_mid, 3)

    t1_len = (T - 1) // 2 + 1            # conv1 output length
    t2_len = (t1_len - 1) // 2 + 1       # conv2 (final) output length

    cdt = jnp.dtype(compute_dtype) if compute_dtype is not None else x.dtype
    out_dtype = out_dtype or x.dtype

    # Lane-dense channels: pad every channel dim to a multiple of 128 (exact through
    # conv + LeakyReLU since leaky(0 + 0) == 0); padded output channels are sliced off.
    pad128 = (lambda n: -(-n // 128) * 128) if pad_to_lanes else (lambda n: n)
    hi, hm, ho = pad128(h_in), pad128(h_mid), pad128(h_out)

    # Chip-aware defaults (v7x: 64 MiB VMEM, 2 TensorCores; v5e/v6e: 128 MiB VMEM).
    is_v7 = False
    try:
        is_v7 = "7" in jax.devices()[0].device_kind.lower()
    except Exception:
        pass
    if vmem_limit_bytes is None:
        vmem_limit_bytes = (48 if is_v7 else 96) * 1024 * 1024
    if is_v7 and max(hi, hm, ho) >= 1024:
        t2_tile = min(t2_tile, 192)

    # Final-output time tiling.
    tt = min(t2_tile, t2_len)
    if tt < t2_len:
        tt = max(8, (tt // 8) * 8)       # keep tiled blocks (8,128)-friendly
        if tt >= t2_len:
            tt = t2_len
    n_t = -(-t2_len // tt)
    if B * n_t < 2 and t2_len >= 16:     # keep both v7x TensorCores busy
        tt = (((t2_len + 1) // 2) + 7) // 8 * 8
        n_t = -(-t2_len // tt)
    te = tt + 8                          # +1 halo row, rounded up to a full sublane group

    # Phase-split, per-tile input windows (single wrapper-side copy; replaces both the
    # strided in-kernel reads and the separate halo input of the previous version).
    # Padded row w == x[w - 3] (left pad 3 = conv1 pad(1) + conv2's one-row look-back).
    m_rows = n_t * tt + 8
    xp = jnp.pad(x.astype(cdt), ((0, 0), (3, 4 * m_rows - 3 - T), (0, hi - h_in)))
    xph = xp.reshape(B, m_rows, 4, hi).transpose(0, 2, 1, 3)          # (B, 4, m_rows, hi)
    win = (jnp.arange(n_t) * tt)[:, None] + jnp.arange(te)[None, :]   # overlapping (+8 halo)
    x_tiles = xph[:, :, win, :]                                       # (B, 4, n_t, te, hi)
    x_tiles = x_tiles.transpose(0, 2, 1, 3, 4).reshape(B, n_t, 4 * te, hi)

    # Per-tap weights as (tap, in, out), zero-padded to lane multiples; biases stay f32.
    w1 = jnp.pad(jnp.transpose(params["w1"], (2, 1, 0)).astype(cdt),
                 ((0, 0), (0, hi - h_in), (0, hm - h_mid)))
    w2 = jnp.pad(jnp.transpose(params["w2"], (2, 1, 0)).astype(cdt),
                 ((0, 0), (0, hm - h_mid), (0, ho - h_out)))
    b1 = jnp.pad(params["b1"].astype(jnp.float32), (0, hm - h_mid)).reshape(1, hm)
    b2 = jnp.pad(params["b2"].astype(jnp.float32), (0, ho - h_out)).reshape(1, ho)

    def const_spec(shape):
        nm = len(shape)
        if single_buffer_weights:
            # Constant block index -> double-buffering these is pure VMEM waste (v7x).
            return pl.BlockSpec(shape, lambda b, j: (0,) * nm,
                                pipeline_mode=pl.Buffered(1))
        return pl.BlockSpec(shape, lambda b, j: (0,) * nm)

    kernel = functools.partial(_fused_frame_kernel, t1_len=t1_len, tt=tt, te=te)
    out = pl.pallas_call(
        kernel,
        out_shape=jax.ShapeDtypeStruct((B, t2_len, ho), out_dtype),
        grid=(B, n_t),
        in_specs=[
            pl.BlockSpec((None, None, 4 * te, hi), lambda b, j: (b, j, 0, 0)),
            const_spec((3, hi, hm)),
            const_spec((1, hm)),
            const_spec((3, hm, ho)),
            const_spec((1, ho)),
        ],
        out_specs=pl.BlockSpec((None, tt, ho), lambda b, j: (b, j, 0)),
        compiler_params=pltpu.CompilerParams(
            dimension_semantics=("parallel", "parallel"),
            vmem_limit_bytes=vmem_limit_bytes,
        ),
    )(x_tiles, w1, b1, w2, b2)
    return out[..., :h_out] if ho != h_out else out


# ---------------------- pure-JAX reference for checking ----------------------
def _conv_ref(x, weight, bias):
    w_wio = jnp.transpose(weight, (2, 1, 0))  # (W=3, I=H_in, O=H_out)
    y = jax.lax.conv_general_dilated(
        x, w_wio, window_strides=(2,), padding=((1, 1),),
        dimension_numbers=("NWC", "WIO", "NWC"))
    y = y + bias
    return jnp.where(y > 0, y, LEAKY_SLOPE * y)


def _ref_forward(x, params):
    z = _conv_ref(x, params["w1"], params["b1"])
    z = _conv_ref(z, params["w2"], params["b2"])
    return z


def init_params(key, hidden_size):
    k = 1.0 / (hidden_size * 3)
    bound = jnp.sqrt(k)
    k1, k2, k3, k4 = jax.random.split(key, 4)
    return {
        "w1": jax.random.uniform(k1, (hidden_size, hidden_size, 3),
                                 jnp.float32, -bound, bound),
        "b1": jax.random.uniform(k2, (hidden_size,), jnp.float32, -bound, bound),
        "w2": jax.random.uniform(k3, (hidden_size, hidden_size, 3),
                                 jnp.float32, -bound, bound),
        "b2": jax.random.uniform(k4, (hidden_size,), jnp.float32, -bound, bound),
    }


if __name__ == "__main__":
    key = jax.random.PRNGKey(0)
    kx, kp = jax.random.split(key)

    B, T, H = 2, 8, 32
    x = jax.random.normal(kx, (B, T, H), jnp.float32)
    params = init_params(kp, H)
    ref = _ref_forward(x, params)

    # f32 MXU path: strict check against the XLA reference.
    out_f32 = jax.block_until_ready(
        frame_embedding_forward(x, params, compute_dtype=jnp.float32))
    assert out_f32.shape == (B, 2, H), out_f32.shape          # T = 8 -> 4 -> 2
    assert jnp.allclose(out_f32, ref, atol=1e-4, rtol=1e-4), "f32 mismatch vs reference"

    # bf16 MXU path (default): bf16 operands, f32 accumulation -> looser tolerance.
    out_bf16 = jax.block_until_ready(frame_embedding_forward(x, params))
    assert jnp.allclose(out_bf16, ref, atol=1e-1, rtol=1e-1), "bf16 mismatch vs reference"

    # Odd conv1 length (exercises the fused layer's right-edge zero mask).
    x_odd = jax.random.normal(kx, (B, 10, H), jnp.float32)
    out_odd = jax.block_until_ready(
        frame_embedding_forward(x_odd, params, compute_dtype=jnp.float32))
    assert jnp.allclose(out_odd, _ref_forward(x_odd, params), atol=1e-4, rtol=1e-4), \
        "odd-length mismatch vs reference"

    # Multi-tile time axis with a non-divisible last block.
    x_long = jax.random.normal(kx, (B, 100, H), jnp.float32)
    out_long = jax.block_until_ready(
        frame_embedding_forward(x_long, params, compute_dtype=jnp.float32, t2_tile=8))
    ref_long = _ref_forward(x_long, params)
    assert out_long.shape == ref_long.shape, (out_long.shape, ref_long.shape)
    assert jnp.allclose(out_long, ref_long, atol=1e-4, rtol=1e-4), \
        "tiled mismatch vs reference"

    print("KERNEL_OK")
</pallas_src>

<mosaic_0001>
module attributes {stable_mosaic.version = 11 : i64} {
  func.func @_fused_frame_kernel(%arg0: i32, %arg1: i32, %arg2: memref<1x1x40x128xf32, #tpu.memory_space<vmem>>, %arg3: memref<3x128x128xf32, #tpu.memory_space<vmem>>, %arg4: memref<1x128xf32, #tpu.memory_space<vmem>>, %arg5: memref<3x128x128xf32, #tpu.memory_space<vmem>>, %arg6: memref<1x128xf32, #tpu.memory_space<vmem>>, %arg7: memref<1x2x128xf32, #tpu.memory_space<vmem>>) attributes {dimension_semantics = [#tpu.dimension_semantics<parallel>, #tpu.dimension_semantics<parallel>], iteration_bounds = array<i64: 2, 1>, scalar_prefetch = 0 : i64, scratch_operands = 0 : i64, tpu.core_type = #tpu.core_type<tc>, window_params = [{transform_indices = @transform_0, window_bounds = array<i64: 1, 1, 40, 128>}, {pipeline_mode = #tpu.pipeline_mode<synchronous>, transform_indices = @transform_1, window_bounds = array<i64: 3, 128, 128>}, {pipeline_mode = #tpu.pipeline_mode<synchronous>, transform_indices = @transform_2, window_bounds = array<i64: 1, 128>}, {pipeline_mode = #tpu.pipeline_mode<synchronous>, transform_indices = @transform_3, window_bounds = array<i64: 3, 128, 128>}, {pipeline_mode = #tpu.pipeline_mode<synchronous>, transform_indices = @transform_4, window_bounds = array<i64: 1, 128>}, {transform_indices = @transform_5, window_bounds = array<i64: 1, 2, 128>}]} {
    %c0 = arith.constant 0 : index
    %c0_0 = arith.constant 0 : index
    %c0_1 = arith.constant 0 : index
    %c0_2 = arith.constant 0 : index
    %0 = vector.load %arg2[%c0, %c0_0, %c0_1, %c0_2] : memref<1x1x40x128xf32, #tpu.memory_space<vmem>>, vector<1x1x10x128xf32>
    %1 = vector.shape_cast %0 : vector<1x1x10x128xf32> to vector<10x128xf32>
    %c0_3 = arith.constant 0 : index
    %c0_4 = arith.constant 0 : index
    %c10 = arith.constant 10 : index
    %c0_5 = arith.constant 0 : index
    %2 = vector.load %arg2[%c0_3, %c0_4, %c10, %c0_5] : memref<1x1x40x128xf32, #tpu.memory_space<vmem>>, vector<1x1x10x128xf32>
    %3 = vector.shape_cast %2 : vector<1x1x10x128xf32> to vector<10x128xf32>
    %c0_6 = arith.constant 0 : index
    %c0_7 = arith.constant 0 : index
    %c20 = arith.constant 20 : index
    %c0_8 = arith.constant 0 : index
    %4 = vector.load %arg2[%c0_6, %c0_7, %c20, %c0_8] : memref<1x1x40x128xf32, #tpu.memory_space<vmem>>, vector<1x1x10x128xf32>
    %5 = vector.shape_cast %4 : vector<1x1x10x128xf32> to vector<10x128xf32>
    %c0_9 = arith.constant 0 : index
    %c0_10 = arith.constant 0 : index
    %c30 = arith.constant 30 : index
    %c0_11 = arith.constant 0 : index
    %6 = vector.load %arg2[%c0_9, %c0_10, %c30, %c0_11] : memref<1x1x40x128xf32, #tpu.memory_space<vmem>>, vector<1x1x2x128xf32>
    %7 = vector.shape_cast %6 : vector<1x1x2x128xf32> to vector<2x128xf32>
    %c0_12 = arith.constant 0 : index
    %c0_13 = arith.constant 0 : index
    %c1 = arith.constant 1 : index
    %c0_14 = arith.constant 0 : index
    %8 = vector.load %arg2[%c0_12, %c0_13, %c1, %c0_14] : memref<1x1x40x128xf32, #tpu.memory_space<vmem>>, vector<1x1x2x128xf32>
    %9 = vector.shape_cast %8 : vector<1x1x2x128xf32> to vector<2x128xf32>
    %c0_15 = arith.constant 0 : index
    %c0_16 = arith.constant 0 : index
    %c0_17 = arith.constant 0 : index
    %10 = vector.load %arg3[%c0_15, %c0_16, %c0_17] : memref<3x128x128xf32, #tpu.memory_space<vmem>>, vector<1x128x128xf32>
    %11 = vector.shape_cast %10 : vector<1x128x128xf32> to vector<128x128xf32>
    %c1_18 = arith.constant 1 : index
    %c0_19 = arith.constant 0 : index
    %c0_20 = arith.constant 0 : index
    %12 = vector.load %arg3[%c1_18, %c0_19, %c0_20] : memref<3x128x128xf32, #tpu.memory_space<vmem>>, vector<1x128x128xf32>
    %13 = vector.shape_cast %12 : vector<1x128x128xf32> to vector<128x128xf32>
    %c2 = arith.constant 2 : index
    %c0_21 = arith.constant 0 : index
    %c0_22 = arith.constant 0 : index
    %14 = vector.load %arg3[%c2, %c0_21, %c0_22] : memref<3x128x128xf32, #tpu.memory_space<vmem>>, vector<1x128x128xf32>
    %15 = vector.shape_cast %14 : vector<1x128x128xf32> to vector<128x128xf32>
    %c0_23 = arith.constant 0 : index
    %c0_24 = arith.constant 0 : index
    %16 = vector.load %arg4[%c0_23, %c0_24] : memref<1x128xf32, #tpu.memory_space<vmem>>, vector<1x128xf32>
    %cst = arith.constant dense<0.000000e+00> : vector<10x128xf32>
    %17 = tpu.matmul %1, %11, %cst {dimension_numbers = #tpu.dot_dimension_numbers<[1], [0], [0], [1], [0, 0, 1, 1], [], []>} : vector<10x128xf32>, vector<128x128xf32>, vector<10x128xf32> -> vector<10x128xf32>
    %18 = vector.extract_strided_slice %5 {offsets = [0, 0], sizes = [2, 128], strides = [1, 1]} : vector<10x128xf32> to vector<2x128xf32>
    %cst_25 = arith.constant dense<0.000000e+00> : vector<2x128xf32>
    %19 = tpu.matmul %18, %11, %cst_25 {dimension_numbers = #tpu.dot_dimension_numbers<[1], [0], [0], [1], [0, 0, 1, 1], [], []>} : vector<2x128xf32>, vector<128x128xf32>, vector<2x128xf32> -> vector<2x128xf32>
    %cst_26 = arith.constant dense<0.000000e+00> : vector<10x128xf32>
    %20 = tpu.matmul %3, %13, %cst_26 {dimension_numbers = #tpu.dot_dimension_numbers<[1], [0], [0], [1], [0, 0, 1, 1], [], []>} : vector<10x128xf32>, vector<128x128xf32>, vector<10x128xf32> -> vector<10x128xf32>
    %21 = arith.addf %17, %20 : vector<10x128xf32>
    %cst_27 = arith.constant dense<0.000000e+00> : vector<2x128xf32>
    %22 = tpu.matmul %7, %13, %cst_27 {dimension_numbers = #tpu.dot_dimension_numbers<[1], [0], [0], [1], [0, 0, 1, 1], [], []>} : vector<2x128xf32>, vector<128x128xf32>, vector<2x128xf32> -> vector<2x128xf32>
    %23 = arith.addf %19, %22 : vector<2x128xf32>
    %cst_28 = arith.constant dense<0.000000e+00> : vector<10x128xf32>
    %24 = tpu.matmul %5, %15, %cst_28 {dimension_numbers = #tpu.dot_dimension_numbers<[1], [0], [0], [1], [0, 0, 1, 1], [], []>} : vector<10x128xf32>, vector<128x128xf32>, vector<10x128xf32> -> vector<10x128xf32>
    %25 = arith.addf %21, %24 : vector<10x128xf32>
    %cst_29 = arith.constant dense<0.000000e+00> : vector<2x128xf32>
    %26 = tpu.matmul %9, %15, %cst_29 {dimension_numbers = #tpu.dot_dimension_numbers<[1], [0], [0], [1], [0, 0, 1, 1], [], []>} : vector<2x128xf32>, vector<128x128xf32>, vector<2x128xf32> -> vector<2x128xf32>
    %27 = arith.addf %23, %26 : vector<2x128xf32>
    %28 = vector.broadcast %16 : vector<1x128xf32> to vector<10x128xf32>
    %29 = arith.addf %25, %28 : vector<10x128xf32>
    %cst_30 = arith.constant 0.000000e+00 : f32
    %30 = vector.broadcast %cst_30 : f32 to vector<10x128xf32>
    %31 = arith.cmpf ogt, %29, %30 : vector<10x128xf32>
    %cst_31 = arith.constant 0.00999999977 : f32
    %32 = vector.broadcast %cst_31 : f32 to vector<10x128xf32>
    %33 = arith.mulf %32, %29 : vector<10x128xf32>
    %34 = arith.select %31, %29, %33 : vector<10x128xi1>, vector<10x128xf32>
    %35 = vector.broadcast %16 : vector<1x128xf32> to vector<2x128xf32>
    %36 = arith.addf %27, %35 : vector<2x128xf32>
    %cst_32 = arith.constant 0.000000e+00 : f32
    %37 = vector.broadcast %cst_32 : f32 to vector<2x128xf32>
    %38 = arith.cmpf ogt, %36, %37 : vector<2x128xf32>
    %cst_33 = arith.constant 0.00999999977 : f32
    %39 = vector.broadcast %cst_33 : f32 to vector<2x128xf32>
    %40 = arith.mulf %39, %36 : vector<2x128xf32>
    %41 = arith.select %38, %36, %40 : vector<2x128xi1>, vector<2x128xf32>
    %42 = tpu.iota {dimensions = array<i32: 0>} : vector<10x1xi32>
    %c2_i32 = arith.constant 2 : i32
    %43 = arith.muli %arg1, %c2_i32 : i32
    %44 = vector.broadcast %43 : i32 to vector<10x1xi32>
    %45 = arith.addi %44, %42 : vector<10x1xi32>
    %c2_i32_34 = arith.constant 2 : i32
    %46 = vector.broadcast %c2_i32_34 : i32 to vector<10x1xi32>
    %47 = arith.muli %46, %45 : vector<10x1xi32>
    %c1_i32 = arith.constant 1 : i32
    %48 = vector.broadcast %c1_i32 : i32 to vector<10x1xi32>
    %49 = arith.subi %47, %48 : vector<10x1xi32>
    %c0_i32 = arith.constant 0 : i32
    %50 = vector.broadcast %c0_i32 : i32 to vector<10x1xi32>
    %51 = arith.cmpi sge, %49, %50 : vector<10x1xi32>
    %c4_i32 = arith.constant 4 : i32
    %52 = vector.broadcast %c4_i32 : i32 to vector<10x1xi32>
    %53 = arith.cmpi slt, %49, %52 : vector<10x1xi32>
    %54 = arith.andi %51, %53 : vector<10x1xi1>
    %cst_35 = arith.constant 0.000000e+00 : f32
    %55 = vector.shape_cast %54 : vector<10x1xi1> to vector<10x1xi1>
    %56 = vector.broadcast %55 : vector<10x1xi1> to vector<10x128xi1>
    %57 = vector.broadcast %cst_35 : f32 to vector<10x128xf32>
    %58 = arith.select %56, %34, %57 : vector<10x128xi1>, vector<10x128xf32>
    %59 = vector.extract_strided_slice %58 {offsets = [0, 0], sizes = [2, 128], strides = [1, 1]} : vector<10x128xf32> to vector<2x128xf32>
    %60 = vector.extract_strided_slice %58 {offsets = [1, 0], sizes = [2, 128], strides = [1, 1]} : vector<10x128xf32> to vector<2x128xf32>
    %c0_36 = arith.constant 0 : index
    %c0_37 = arith.constant 0 : index
    %c0_38 = arith.constant 0 : index
    %61 = vector.load %arg5[%c0_36, %c0_37, %c0_38] : memref<3x128x128xf32, #tpu.memory_space<vmem>>, vector<1x128x128xf32>
    %62 = vector.shape_cast %61 : vector<1x128x128xf32> to vector<128x128xf32>
    %cst_39 = arith.constant dense<0.000000e+00> : vector<2x128xf32>
    %63 = tpu.matmul %59, %62, %cst_39 {dimension_numbers = #tpu.dot_dimension_numbers<[1], [0], [0], [1], [0, 0, 1, 1], [], []>} : vector<2x128xf32>, vector<128x128xf32>, vector<2x128xf32> -> vector<2x128xf32>
    %c1_40 = arith.constant 1 : index
    %c0_41 = arith.constant 0 : index
    %c0_42 = arith.constant 0 : index
    %64 = vector.load %arg5[%c1_40, %c0_41, %c0_42] : memref<3x128x128xf32, #tpu.memory_space<vmem>>, vector<1x128x128xf32>
    %65 = vector.shape_cast %64 : vector<1x128x128xf32> to vector<128x128xf32>
    %cst_43 = arith.constant dense<0.000000e+00> : vector<2x128xf32>
    %66 = tpu.matmul %41, %65, %cst_43 {dimension_numbers = #tpu.dot_dimension_numbers<[1], [0], [0], [1], [0, 0, 1, 1], [], []>} : vector<2x128xf32>, vector<128x128xf32>, vector<2x128xf32> -> vector<2x128xf32>
    %67 = arith.addf %63, %66 : vector<2x128xf32>
    %c2_44 = arith.constant 2 : index
    %c0_45 = arith.constant 0 : index
    %c0_46 = arith.constant 0 : index
    %68 = vector.load %arg5[%c2_44, %c0_45, %c0_46] : memref<3x128x128xf32, #tpu.memory_space<vmem>>, vector<1x128x128xf32>
    %69 = vector.shape_cast %68 : vector<1x128x128xf32> to vector<128x128xf32>
    %cst_47 = arith.constant dense<0.000000e+00> : vector<2x128xf32>
    %70 = tpu.matmul %60, %69, %cst_47 {dimension_numbers = #tpu.dot_dimension_numbers<[1], [0], [0], [1], [0, 0, 1, 1], [], []>} : vector<2x128xf32>, vector<128x128xf32>, vector<2x128xf32> -> vector<2x128xf32>
    %71 = arith.addf %67, %70 : vector<2x128xf32>
    %c0_48 = arith.constant 0 : index
    %c0_49 = arith.constant 0 : index
    %72 = vector.load %arg6[%c0_48, %c0_49] : memref<1x128xf32, #tpu.memory_space<vmem>>, vector<1x128xf32>
    %73 = vector.broadcast %72 : vector<1x128xf32> to vector<2x128xf32>
    %74 = arith.addf %71, %73 : vector<2x128xf32>
    %cst_50 = arith.constant 0.000000e+00 : f32
    %75 = vector.broadcast %cst_50 : f32 to vector<2x128xf32>
    %76 = arith.cmpf ogt, %74, %75 : vector<2x128xf32>
    %cst_51 = arith.constant 0.00999999977 : f32
    %77 = vector.broadcast %cst_51 : f32 to vector<2x128xf32>
    %78 = arith.mulf %77, %74 : vector<2x128xf32>
    %79 = arith.select %76, %74, %78 : vector<2x128xi1>, vector<2x128xf32>
    %c0_52 = arith.constant 0 : index
    %c0_53 = arith.constant 0 : index
    %c0_54 = arith.constant 0 : index
    %80 = vector.load %arg7[%c0_52, %c0_53, %c0_54] : memref<1x2x128xf32, #tpu.memory_space<vmem>>, vector<1x2x128xf32>
    %81 = vector.shape_cast %80 : vector<1x2x128xf32> to vector<2x128xf32>
    %82 = vector.shape_cast %79 : vector<2x128xf32> to vector<1x2x128xf32>
    tpu.vector_store %arg7[%c0_52, %c0_53, %c0_54], %82 {strides = array<i32>} : memref<1x2x128xf32, #tpu.memory_space<vmem>>, vector<1x2x128xf32>,
    return
  }
  func.func @transform_0(%arg0: i32, %arg1: i32) -> (i32, i32, i32, i32) {
    %c0_i32 = arith.constant 0 : i32
    %c0_i32_0 = arith.constant 0 : i32
    %c0_i32_1 = arith.constant 0 : i32
    return %arg0, %arg1, %c0_i32, %c0_i32_0 : i32, i32, i32, i32
  }
  func.func @transform_1(%arg0: i32, %arg1: i32) -> (i32, i32, i32) {
    %c0_i32 = arith.constant 0 : i32
    %c0_i32_0 = arith.constant 0 : i32
    %c0_i32_1 = arith.constant 0 : i32
    %c0_i32_2 = arith.constant 0 : i32
    return %c0_i32, %c0_i32_0, %c0_i32_1 : i32, i32, i32
  }
  func.func @transform_2(%arg0: i32, %arg1: i32) -> (i32, i32) {
    %c0_i32 = arith.constant 0 : i32
    %c0_i32_0 = arith.constant 0 : i32
    %c0_i32_1 = arith.constant 0 : i32
    return %c0_i32, %c0_i32_0 : i32, i32
  }
  func.func @transform_3(%arg0: i32, %arg1: i32) -> (i32, i32, i32) {
    %c0_i32 = arith.constant 0 : i32
    %c0_i32_0 = arith.constant 0 : i32
    %c0_i32_1 = arith.constant 0 : i32
    %c0_i32_2 = arith.constant 0 : i32
    return %c0_i32, %c0_i32_0, %c0_i32_1 : i32, i32, i32
  }
  func.func @transform_4(%arg0: i32, %arg1: i32) -> (i32, i32) {
    %c0_i32 = arith.constant 0 : i32
    %c0_i32_0 = arith.constant 0 : i32
    %c0_i32_1 = arith.constant 0 : i32
    return %c0_i32, %c0_i32_0 : i32, i32
  }
  func.func @transform_5(%arg0: i32, %arg1: i32) -> (i32, i32, i32) {
    %c0_i32 = arith.constant 0 : i32
    %c0_i32_0 = arith.constant 0 : i32
    return %arg0, %arg1, %c0_i32 : i32, i32, i32
  }
}

</mosaic_0001>

<llo_original>
// kernel: tpu_custom_call.1
$region0: #{tpu_custom_call.1}
  #allocation0 [shape = 'u32[]', space=smem, size = 0x4, offset = 0x4, fixed_abs, tag = 'smem constant byte address 0x4 - core index']
  #allocation1 [shape = 'u32[144,128]{1,0:T(1,128)}', space=vmem, size = 0x12000, scoped, tag = 'internal scratch']
  %s0 = inlined_call_operand.hbm [shape: f32[2,1,40,128], index: 0, kind: input, shape index: {}]
  %s1 = inlined_call_operand.hbm [shape: f32[3,128,128], index: 1, kind: input, shape index: {}]
  %s2 = inlined_call_operand.hbm [shape: f32[1,128], index: 2, kind: input, shape index: {}]
  %s3 = inlined_call_operand.hbm [shape: f32[3,128,128], index: 3, kind: input, shape index: {}]
  %s4 = inlined_call_operand.hbm [shape: f32[1,128], index: 4, kind: input, shape index: {}]
  %s5 = inlined_call_operand.hbm [shape: f32[2,2,128], index: 5, kind: output, shape index: {}]
  %s6 = sld [smem:[#allocation0]]
  $region73: #{tpu_custom_call.1} parent=0
    _
  %s8 = ssub.s32 1, %s6
  %s9 = scalar_select 0, %s8, %s6
  $region1: #{tpu_custom_call.1} parent=0
    #allocation2 [shape = 'u8[40960]{0}', space=vmem, size = 0xa000, scoped, tag = 'input window, operand 0']
    #allocation3 [shape = 's32[2]{0}', space=sflag, size = 0x8, scoped, tag = 'scoped memory for tpu_custom_call.1']
    #allocation4 [shape = 's32[2]{0}', space=sflag, size = 0x8, scoped, tag = 'scoped memory for tpu_custom_call.1']
    #allocation5 [shape = 'u8[196608]{0}', space=vmem, size = 0x30000, scoped, tag = 'input window, operand 1, single buffered']
    #allocation6 [shape = 's32[1]{0}', space=sflag, size = 0x4, scoped, tag = 'scoped memory for tpu_custom_call.1']
    #allocation7 [shape = 'u8[512]{0}', space=vmem, size = 0x400, scoped, tag = 'input window, operand 2, single buffered']
    #allocation8 [shape = 'u8[196608]{0}', space=vmem, size = 0x30000, scoped, tag = 'input window, operand 3, single buffered']
    #allocation9 [shape = 's32[1]{0}', space=sflag, size = 0x4, scoped, tag = 'scoped memory for tpu_custom_call.1']
    #allocation10 [shape = 'u8[512]{0}', space=vmem, size = 0x400, scoped, tag = 'input window, operand 4, single buffered']
    #allocation11 [shape = 'u8[2048]{0}', space=vmem, size = 0x800, scoped, tag = 'output window, operand 0']
    %10 = vsyncpa [#allocation3], 0
    %s11 = scalar_lea.sflag [#allocation3], 1
    %12 = vsyncpa %s11, 0
    %13 = vsyncpa [#allocation6], 0
    %14 = vsyncpa [#allocation9], 0
    %15 = vsyncpa [#allocation4], 0
    %s16 = scalar_lea.sflag [#allocation4], 1
    %17 = vsyncpa %s16, 0
    loop: start=0, step=1, limit=4
    $region2: #{tpu_custom_call.1} parent=1 // loop_pre_header
      _
    $region3: #{tpu_custom_call.1} parent=1 // loop_header
      %s19 = sphi 0, %s23
      %p20 = scmp.ge.s32.totalorder %s19, 4
      %s26 = sphi 0, %s38
      %s27 = sphi 0, %s34
      %s28 = sphi 0, %s26
      %s29 = sphi 0, %s27
      %s30 = sphi 0, %s28
      %s31 = sphi 0, %s29
      %s43 = sphi 0, %s45
      %s46 = sphi 0, %s43
      %s47 = sphi 0, %s46
      %s63 = sphi 0, %s47
      %s67 = sphi 0, %s67
      %s69 = sphi 0, %s67
      %s70 = sphi 0, %s69
      %s84 = sphi 0, %s70
      %s88 = sphi 0, %s88
      %s90 = sphi 0, %s88
      %s91 = sphi 0, %s90
      %s105 = sphi 0, %s91
      %s109 = sphi 0, %s109
      %s111 = sphi 0, %s109
      %s112 = sphi 0, %s111
      %s126 = sphi 0, %s112
      %s130 = sphi 0, %s130
      %s132 = sphi 0, %s130
      %s133 = sphi 0, %s132
      %s147 = sphi 0, %s133
      %s155 = sphi 0, %s157
      %s158 = sphi 0, %s155
      %s159 = sphi 0, %s158
      %s175 = sphi 0, %s159
    $region4: #{tpu_custom_call.1} parent=1 // loop_header_branch
      %22 = sbr.rel (%p20) target = $region8
    $region5: #{tpu_custom_call.1} parent=1 // loop_body
      %s24 = ssub.s32 %s19, 1
      %s25 = ssub.s32 %s19, 2
      %s32 = sadd.s32 1, %s27
      %p33 = scmp.ge.s32.totalorder %s32, 1
      %s34 = scalar_select %p33, 0, %s32
      %s35 = sadd.s32 1, %s26
      %s36 = scalar_select %p33, %s35, %s26
      %p37 = scmp.ge.s32.totalorder %s36, 2
      %s38 = scalar_select %p37, 0, %s36
      %s39 = ssub.s32 %s26, %s38
      %s40 = ssub.s32 %s27, %s34
      %s41 = sor.u32 %s39, %s40
      %p42 = scmp.eq.s32.totalorder %s41, 0
      %s44 = sadd.s32 %s43, 1
      %s45 = scalar_select %p42, %s43, %s44
      %p48 = pneg %p42
      %p49 = scmp.eq.s32.totalorder %s19, 1
      %p50 = por %p48, %p49
      %p51 = scmp.ne.s32.totalorder %s43, %s46
      %p52 = scmp.eq.s32.totalorder %s19, 0
      %p53 = por %p51, %p52
      %p54 = scmp.ne.s32.totalorder %s43, %s46
      %p55 = scmp.eq.s32.totalorder %s24, 1
      %p56 = por %p54, %p55
      %p57 = scmp.ne.s32.totalorder %s46, %s47
      %p58 = scmp.eq.s32.totalorder %s24, 0
      %p59 = por %p57, %p58
      %p60 = scmp.ne.s32.totalorder %s46, %s47
      %p61 = scmp.eq.s32.totalorder %s25, 1
      %p62 = por %p60, %p61
      %p64 = scmp.ne.s32.totalorder %s47, %s63
      %p65 = scmp.eq.s32.totalorder %s25, 0
      %p66 = por %p64, %p65
      %s68 = sadd.s32 %s67, 1
      %p71 = scmp.eq.s32.totalorder %s19, 1
      %p72 = scmp.ne.s32.totalorder %s67, %s69
      %p73 = scmp.eq.s32.totalorder %s19, 0
      %p74 = por %p72, %p73
      %p75 = scmp.ne.s32.totalorder %s67, %s69
      %p76 = scmp.eq.s32.totalorder %s24, 1
      %p77 = por %p75, %p76
      %p78 = scmp.ne.s32.totalorder %s69, %s70
      %p79 = scmp.eq.s32.totalorder %s24, 0
      %p80 = por %p78, %p79
      %p81 = scmp.ne.s32.totalorder %s69, %s70
      %p82 = scmp.eq.s32.totalorder %s25, 1
      %p83 = por %p81, %p82
      %p85 = scmp.ne.s32.totalorder %s70, %s84
      %p86 = scmp.eq.s32.totalorder %s25, 0
      %p87 = por %p85, %p86
      %s89 = sadd.s32 %s88, 1
      %p92 = scmp.eq.s32.totalorder %s19, 1
      %p93 = scmp.ne.s32.totalorder %s88, %s90
      %p94 = scmp.eq.s32.totalorder %s19, 0
      %p95 = por %p93, %p94
      %p96 = scmp.ne.s32.totalorder %s88, %s90
      %p97 = scmp.eq.s32.totalorder %s24, 1
      %p98 = por %p96, %p97
      %p99 = scmp.ne.s32.totalorder %s90, %s91
      %p100 = scmp.eq.s32.totalorder %s24, 0
      %p101 = por %p99, %p100
      %p102 = scmp.ne.s32.totalorder %s90, %s91
      %p103 = scmp.eq.s32.totalorder %s25, 1
      %p104 = por %p102, %p103
      %p106 = scmp.ne.s32.totalorder %s91, %s105
      %p107 = scmp.eq.s32.totalorder %s25, 0
      %p108 = por %p106, %p107
      %s110 = sadd.s32 %s109, 1
      %p113 = scmp.eq.s32.totalorder %s19, 1
      %p114 = scmp.ne.s32.totalorder %s109, %s111
      %p115 = scmp.eq.s32.totalorder %s19, 0
      %p116 = por %p114, %p115
      %p117 = scmp.ne.s32.totalorder %s109, %s111
      %p118 = scmp.eq.s32.totalorder %s24, 1
      %p119 = por %p117, %p118
      %p120 = scmp.ne.s32.totalorder %s111, %s112
      %p121 = scmp.eq.s32.totalorder %s24, 0
      %p122 = por %p120, %p121
      %p123 = scmp.ne.s32.totalorder %s111, %s112
      %p124 = scmp.eq.s32.totalorder %s25, 1
      %p125 = por %p123, %p124
      %p127 = scmp.ne.s32.totalorder %s112, %s126
      %p128 = scmp.eq.s32.totalorder %s25, 0
      %p129 = por %p127, %p128
      %s131 = sadd.s32 %s130, 1
      %p134 = scmp.eq.s32.totalorder %s19, 1
      %p135 = scmp.ne.s32.totalorder %s130, %s132
      %p136 = scmp.eq.s32.totalorder %s19, 0
      %p137 = por %p135, %p136
      %p138 = scmp.ne.s32.totalorder %s130, %s132
      %p139 = scmp.eq.s32.totalorder %s24, 1
      %p140 = por %p138, %p139
      %p141 = scmp.ne.s32.totalorder %s132, %s133
      %p142 = scmp.eq.s32.totalorder %s24, 0
      %p143 = por %p141, %p142
      %p144 = scmp.ne.s32.totalorder %s132, %s133
      %p145 = scmp.eq.s32.totalorder %s25, 1
      %p146 = por %p144, %p145
      %p148 = scmp.ne.s32.totalorder %s133, %s147
      %p149 = scmp.eq.s32.totalorder %s25, 0
      %p150 = por %p148, %p149
      %s151 = ssub.s32 %s26, %s38
      %s152 = ssub.s32 %s27, %s34
      %s153 = sor.u32 %s151, %s152
      %p154 = scmp.eq.s32.totalorder %s153, 0
      %s156 = sadd.s32 %s155, 1
      %s157 = scalar_select %p154, %s155, %s156
      %p160 = pneg %p154
      %p161 = scmp.eq.s32.totalorder %s19, 1
      %p162 = por %p160, %p161
      %p163 = scmp.ne.s32.totalorder %s155, %s158
      %p164 = scmp.eq.s32.totalorder %s19, 0
      %p165 = por %p163, %p164
      %p166 = scmp.ne.s32.totalorder %s155, %s158
      %p167 = scmp.eq.s32.totalorder %s24, 1
      %p168 = por %p166, %p167
      %p169 = scmp.ne.s32.totalorder %s158, %s159
      %p170 = scmp.eq.s32.totalorder %s24, 0
      %p171 = por %p169, %p170
      %p172 = scmp.ne.s32.totalorder %s158, %s159
      %p173 = scmp.eq.s32.totalorder %s25, 1
      %p174 = por %p172, %p173
      %p176 = scmp.ne.s32.totalorder %s159, %s175
      %p177 = scmp.eq.s32.totalorder %s25, 0
      %p178 = por %p176, %p177
      %p179 = scmp.le.s32.totalorder 1, %s19
      %p180 = scmp.lt.s32.totalorder %s19, 3
      %p181 = pnand %p179, %p180
      %p182 = pneg %p181
      // Predicated region
      $region9: #{tpu_custom_call.1} parent=5 // pred_check
        _
      $region10: #{tpu_custom_call.1} parent=5 // pred_check_branch
        %184 = sbr.rel (%p181) target = $region12
      $region11: #{tpu_custom_call.1} parent=5 // pred_region
        %s185 = ssub.s32 %s19, 1
        // Predicated region
        $region13: #{tpu_custom_call.1} parent=11 // pred_check
          %p186 = pneg %p80
        $region14: #{tpu_custom_call.1} parent=11 // pred_check_branch
          %188 = sbr.rel (%p186) target = $region16
        $region15: #{tpu_custom_call.1} parent=11 // pred_region
          %s190 = ssub.s32 6144, 6144
          %191 = vsyncadd [#allocation6], %s190
          %s192 = sshll.u32 [#allocation5], 4
          %s193 = int_to_ptr.vmem [resolvable:$true] %s192
          %198 = dma.hbm_to_vmem [thread:$0]  %s1, 6144, %s193, [#allocation6], 128, 128, 8
        $region16: #{tpu_custom_call.1} parent=11 // pred_fallthru
          _
        // Predicated region
        $region17: #{tpu_custom_call.1} parent=11 // pred_check
          %p199 = pneg %p101
        $region18: #{tpu_custom_call.1} parent=11 // pred_check_branch
          %201 = sbr.rel (%p199) target = $region20
        $region19: #{tpu_custom_call.1} parent=11 // pred_region
          %s203 = ssub.s32 16, 16
          %204 = vsyncadd [#allocation6], %s203
          %s206 = sshll.u32 [#allocation7], 4
          %s207 = int_to_ptr.vmem [resolvable:$true] %s206
          %209 = dma.hbm_to_vmem [thread:$0]  %s2, 16, %s207, [#allocation6]
        $region20: #{tpu_custom_call.1} parent=11 // pred_fallthru
          _
        // Predicated region
        $region21: #{tpu_custom_call.1} parent=11 // pred_check
          %p210 = pneg %p122
        $region22: #{tpu_custom_call.1} parent=11 // pred_check_branch
          %212 = sbr.rel (%p210) target = $region24
        $region23: #{tpu_custom_call.1} parent=11 // pred_region
          %s214 = ssub.s32 6144, 6144
          %215 = vsyncadd [#allocation9], %s214
          %s216 = sshll.u32 [#allocation8], 4
          %s217 = int_to_ptr.vmem [resolvable:$true] %s216
          %222 = dma.hbm_to_vmem [thread:$0]  %s3, 6144, %s217, [#allocation9], 128, 128, 8
        $region24: #{tpu_custom_call.1} parent=11 // pred_fallthru
          _
        // Predicated region
        $region25: #{tpu_custom_call.1} parent=11 // pred_check
          %p223 = pneg %p143
        $region26: #{tpu_custom_call.1} parent=11 // pred_check_branch
          %225 = sbr.rel (%p223) target = $region28
        $region27: #{tpu_custom_call.1} parent=11 // pred_region
          %s227 = ssub.s32 16, 16
          %228 = vsyncadd [#allocation9], %s227
          %s230 = sshll.u32 [#allocation10], 4
          %s231 = int_to_ptr.vmem [resolvable:$true] %s230
          %233 = dma.hbm_to_vmem [thread:$0]  %s4, 16, %s231, [#allocation9]
        $region28: #{tpu_custom_call.1} parent=11 // pred_fallthru
          _
      $region12: #{tpu_custom_call.1} parent=5 // pred_fallthru
        _
      %p234 = scmp.lt.s32.totalorder %s19, 2
      // Predicated region
      $region29: #{tpu_custom_call.1} parent=5 // pred_check
        %p235 = pneg %p234
      $region30: #{tpu_custom_call.1} parent=5 // pred_check_branch
        %237 = sbr.rel (%p235) target = $region32
      $region31: #{tpu_custom_call.1} parent=5 // pred_region
        // Predicated region
        $region33: #{tpu_custom_call.1} parent=31 // pred_check
          %p238 = pneg %p53
        $region34: #{tpu_custom_call.1} parent=31 // pred_check_branch
          %240 = sbr.rel (%p238) target = $region36
        $region35: #{tpu_custom_call.1} parent=31 // pred_region
          %s241 = sand.u32 %s43, 1
          %s242 = scalar_lea.sflag [#allocation3], %s241
          %s243 = sand.u32 %s43, 1
          %s244 = smul.addr %s243, 40
          %s245 = scalar_lea.vmem [#allocation2], %s244
          %s247 = ssub.s32 640, 640
          %248 = vsyncadd %s242, %s247
          %s249 = smul.addr %s27, 5
          %s250 = smul.addr %s26, 5
          %s251 = sadd.s32 %s249, %s250
          %s252 = smul.addr %s251, 128
          %s253 = scalar_lea.hbm %s0, %s252
          %s254 = sshll.u32 %s245, 4
          %s255 = int_to_ptr.vmem [resolvable:$true] %s254
          %260 = dma.hbm_to_vmem [thread:$0]  %s253, 640, %s255, %s242, 128, 128, 8
        $region36: #{tpu_custom_call.1} parent=31 // pred_fallthru
          _
      $region32: #{tpu_custom_call.1} parent=5 // pred_fallthru
        _
      %p261 = scmp.le.s32.totalorder 1, %s19
      %p262 = scmp.lt.s32.totalorder %s19, 3
      %p263 = pnand %p261, %p262
      %p264 = pneg %p263
      // Predicated region
      $region37: #{tpu_custom_call.1} parent=5 // pred_check
        _
      $region38: #{tpu_custom_call.1} parent=5 // pred_check_branch
        %266 = sbr.rel (%p263) target = $region40
      $region39: #{tpu_custom_call.1} parent=5 // pred_region
        %s267 = ssub.s32 %s19, 1
        %s268 = sand.u32 %s46, 1
        %s269 = scalar_lea.sflag [#allocation3], %s268
        %s270 = sand.u32 %s46, 1
        %s271 = smul.addr %s270, 40
        %s272 = scalar_lea.vmem [#allocation2], %s271
        // Predicated region
        $region41: #{tpu_custom_call.1} parent=39 // pred_check
          %p273 = pneg %p59
        $region42: #{tpu_custom_call.1} parent=39 // pred_check_branch
          %275 = sbr.rel (%p273) target = $region44
        $region43: #{tpu_custom_call.1} parent=39 // pred_region
          %276 = dma.done %s269, 640
        $region44: #{tpu_custom_call.1} parent=39 // pred_fallthru
          _
        // Predicated region
        $region45: #{tpu_custom_call.1} parent=39 // pred_check
          %p277 = pneg %p80
        $region46: #{tpu_custom_call.1} parent=39 // pred_check_branch
          %279 = sbr.rel (%p277) target = $region48
        $region47: #{tpu_custom_call.1} parent=39 // pred_region
          %280 = dma.done [#allocation6], 6144
        $region48: #{tpu_custom_call.1} parent=39 // pred_fallthru
          _
        // Predicated region
        $region49: #{tpu_custom_call.1} parent=39 // pred_check
          %p281 = pneg %p101
        $region50: #{tpu_custom_call.1} parent=39 // pred_check_branch
          %283 = sbr.rel (%p281) target = $region52
        $region51: #{tpu_custom_call.1} parent=39 // pred_region
          %284 = dma.done [#allocation6], 16
        $region52: #{tpu_custom_call.1} parent=39 // pred_fallthru
          _
        // Predicated region
        $region53: #{tpu_custom_call.1} parent=39 // pred_check
          %p285 = pneg %p122
        $region54: #{tpu_custom_call.1} parent=39 // pred_check_branch
          %287 = sbr.rel (%p285) target = $region56
        $region55: #{tpu_custom_call.1} parent=39 // pred_region
          %288 = dma.done [#allocation9], 6144
        $region56: #{tpu_custom_call.1} parent=39 // pred_fallthru
          _
        // Predicated region
        $region57: #{tpu_custom_call.1} parent=39 // pred_check
          %p289 = pneg %p143
        $region58: #{tpu_custom_call.1} parent=39 // pred_check_branch
          %291 = sbr.rel (%p289) target = $region60
        $region59: #{tpu_custom_call.1} parent=39 // pred_region
          %292 = dma.done [#allocation9], 16
        $region60: #{tpu_custom_call.1} parent=39 // pred_fallthru
          _
        %s293 = sand.u32 %s46, 1
        %s294 = scalar_lea.sflag [#allocation3], %s293
        %s295 = sand.u32 %s46, 1
        %s296 = smul.addr %s295, 40
        %s297 = scalar_lea.vmem [#allocation2], %s296
        %p298 = pneg %p59
        %p299 = pneg %p56
        %p300 = pneg %p80
        %p301 = pneg %p77
        %p302 = pneg %p101
        %p303 = pneg %p98
        %p304 = pneg %p122
        %p305 = pneg %p119
        %p306 = pneg %p143
        %p307 = pneg %p140
        %p308 = pneg %p171
        %p309 = pneg %p168
        %s310 = sand.u32 %s158, 1
        %s311 = scalar_lea.sflag [#allocation4], %s310
        %s312 = sand.u32 %s158, 1
        %s313 = smul.addr %s312, 2
        %s314 = scalar_lea.vmem [#allocation11], %s313
        %v315 = vld [vmem:[%s272] sm:$0xff]
        %v316 = vld [vmem:[%s272 + $0x8] sm:$0x3]
        %v317 = vld [vmem:[%s272 + $0xa] sm:$0xff]
        %v318 = vld [vmem:[%s272 + $0x12] sm:$0x3]
        %v319 = vld [vmem:[%s272 + $0x14] sm:$0xff]
        %v320 = vld [vmem:[%s272 + $0x1c] sm:$0x3]
        %v321 = vld [vmem:[%s272 + $0x1e] sm:$0x3]
        %v322 = vld [vmem:[%s272 + $0x1] sm:$0x3]
        %v323 = vld [vmem:[#allocation5] sm:$0xff]
        %v324 = vld [vmem:[#allocation5 + $0x8] sm:$0xff]
        %v325 = vld [vmem:[#allocation5 + $0x10] sm:$0xff]
        %v326 = vld [vmem:[#allocation5 + $0x18] sm:$0xff]
        %v327 = vld [vmem:[#allocation5 + $0x20] sm:$0xff]
        %v328 = vld [vmem:[#allocation5 + $0x28] sm:$0xff]
        %v329 = vld [vmem:[#allocation5 + $0x30] sm:$0xff]
        %v330 = vld [vmem:[#allocation5 + $0x38] sm:$0xff]
        %v331 = vld [vmem:[#allocation5 + $0x40] sm:$0xff]
        %v332 = vld [vmem:[#allocation5 + $0x48] sm:$0xff]
        %v333 = vld [vmem:[#allocation5 + $0x50] sm:$0xff]
        %v334 = vld [vmem:[#allocation5 + $0x58] sm:$0xff]
        %v335 = vld [vmem:[#allocation5 + $0x60] sm:$0xff]
        %v336 = vld [vmem:[#allocation5 + $0x68] sm:$0xff]
        %v337 = vld [vmem:[#allocation5 + $0x70] sm:$0xff]
        %v338 = vld [vmem:[#allocation5 + $0x78] sm:$0xff]
        %s339 = scalar_lea.vmem [#allocation5], 128
        %v340 = vld [vmem:[%s339] sm:$0xff]
        %v341 = vld [vmem:[%s339 + $0x8] sm:$0xff]
        %v342 = vld [vmem:[%s339 + $0x10] sm:$0xff]
        %v343 = vld [vmem:[%s339 + $0x18] sm:$0xff]
        %v344 = vld [vmem:[%s339 + $0x20] sm:$0xff]
        %v345 = vld [vmem:[%s339 + $0x28] sm:$0xff]
        %v346 = vld [vmem:[%s339 + $0x30] sm:$0xff]
        %v347 = vld [vmem:[%s339 + $0x38] sm:$0xff]
        %v348 = vld [vmem:[%s339 + $0x40] sm:$0xff]
        %v349 = vld [vmem:[%s339 + $0x48] sm:$0xff]
        %v350 = vld [vmem:[%s339 + $0x50] sm:$0xff]
        %v351 = vld [vmem:[%s339 + $0x58] sm:$0xff]
        %v352 = vld [vmem:[%s339 + $0x60] sm:$0xff]
        %v353 = vld [vmem:[%s339 + $0x68] sm:$0xff]
        %v354 = vld [vmem:[%s339 + $0x70] sm:$0xff]
        %v355 = vld [vmem:[%s339 + $0x78] sm:$0xff]
        %s356 = scalar_lea.vmem [#allocation5], 256
        %v357 = vld [vmem:[%s356] sm:$0xff]
        %v358 = vld [vmem:[%s356 + $0x8] sm:$0xff]
        %v359 = vld [vmem:[%s356 + $0x10] sm:$0xff]
        %v360 = vld [vmem:[%s356 + $0x18] sm:$0xff]
        %v361 = vld [vmem:[%s356 + $0x20] sm:$0xff]
        %v362 = vld [vmem:[%s356 + $0x28] sm:$0xff]
        %v363 = vld [vmem:[%s356 + $0x30] sm:$0xff]
        %v364 = vld [vmem:[%s356 + $0x38] sm:$0xff]
        %v365 = vld [vmem:[%s356 + $0x40] sm:$0xff]
        %v366 = vld [vmem:[%s356 + $0x48] sm:$0xff]
        %v367 = vld [vmem:[%s356 + $0x50] sm:$0xff]
        %v368 = vld [vmem:[%s356 + $0x58] sm:$0xff]
        %v369 = vld [vmem:[%s356 + $0x60] sm:$0xff]
        %v370 = vld [vmem:[%s356 + $0x68] sm:$0xff]
        %v371 = vld [vmem:[%s356 + $0x70] sm:$0xff]
        %v372 = vld [vmem:[%s356 + $0x78] sm:$0xff]
        %v373 = vld [vmem:[#allocation7] sm:$0x1]
        %374 = vmatprep.subr.mxu0 0.0
        %375 = vmatpush1.msra.mxu0 %v340
        %376 = vmatprep.subr.mxu0 0.0
        %377 = vmatpush1.msra.mxu0 %v341
        %378 = vmatprep.subr.mxu0 0.0
        %379 = vmatpush1.msra.mxu0 %v342
        %380 = vmatprep.subr.mxu0 0.0
        %381 = vmatpush1.msra.mxu0 %v343
        %382 = vmatprep.subr.mxu0 0.0
        %383 = vmatpush1.msra.mxu0 %v344
        %384 = vmatprep.subr.mxu0 0.0
        %385 = vmatpush1.msra.mxu0 %v345
        %386 = vmatprep.subr.mxu0 0.0
        %387 = vmatpush1.msra.mxu0 %v346
        %388 = vmatprep.subr.mxu0 0.0
        %389 = vmatpush1.msra.mxu0 %v347
        %390 = vmatprep.subr.mxu0 0.0
        %391 = vmatpush1.msra.mxu0 %v348
        %392 = vmatprep.subr.mxu0 0.0
        %393 = vmatpush1.msra.mxu0 %v349
        %394 = vmatprep.subr.mxu0 0.0
        %395 = vmatpush1.msra.mxu0 %v350
        %396 = vmatprep.subr.mxu0 0.0
        %397 = vmatpush1.msra.mxu0 %v351
        %398 = vmatprep.subr.mxu0 0.0
        %399 = vmatpush1.msra.mxu0 %v352
        %400 = vmatprep.subr.mxu0 0.0
        %401 = vmatpush1.msra.mxu0 %v353
        %402 = vmatprep.subr.mxu0 0.0
        %403 = vmatpush1.msra.mxu0 %v354
        %404 = vmatprep.subr.mxu0 0.0
        %405 = vmatpush1.msra.mxu0 %v355
        %406 = vmatprep.subr.mxu0 0.0
        %407 = vmatpush1.msra.mxu0 0.0
        %408 = vmatprep.subr.mxu0 0.0
        %409 = vmatpush1.msra.mxu0 0.0
        %410 = vmatprep.subr.mxu0 0.0
        %411 = vmatpush1.msra.mxu0 0.0
        %412 = vmatprep.subr.mxu0 0.0
        %413 = vmatpush1.msra.mxu0 0.0
        %414 = vmatprep.subr.mxu0 0.0
        %415 = vmatpush1.msra.mxu0 0.0
        %416 = vmatprep.subr.mxu0 0.0
        %417 = vmatpush1.msra.mxu0 0.0
        %418 = vmatprep.subr.mxu0 0.0
        %419 = vmatpush1.msra.mxu0 0.0
        %420 = vmatprep.subr.mxu0 0.0
        %421 = vmatpush1.msra.mxu0 0.0
        %422 = vmatprep.subr.mxu0 0.0
        %423 = vmatpush1.msra.mxu0 0.0
        %424 = vmatprep.subr.mxu0 0.0
        %425 = vmatpush1.msra.mxu0 0.0
        %426 = vmatprep.subr.mxu0 0.0
        %427 = vmatpush1.msra.mxu0 0.0
        %428 = vmatprep.subr.mxu0 0.0
        %429 = vmatpush1.msra.mxu0 0.0
        %430 = vmatprep.subr.mxu0 0.0
        %431 = vmatpush1.msra.mxu0 0.0
        %432 = vmatprep.subr.mxu0 0.0
        %433 = vmatpush1.msra.mxu0 0.0
        %434 = vmatprep.subr.mxu0 0.0
        %435 = vmatpush1.msra.mxu0 0.0
        %436 = vmatprep.subr.mxu0 0.0
        %437 = vmatpush1.msra.mxu0 0.0
        %438 = vmatprep.mubr.f32.mxu0 0.0
        %439 = vmatmul.mubr.f32.gmra.mrb[0].mxu0 %v317
        %v440 = vpop.f32.mrb[0].mxu0
        %v441 = vadd.f32 0.0, %v440
        %v442 = vpop.f32.mrb[0].mxu0
        %443 = vmatprep.mubr.f32.mxu0 0.0
        %444 = vmatmul.mubr.f32.gmra.mrb[0].mxu0 %v318
        %v445 = vpop.f32.mrb[0].mxu0
        %v446 = vpop.f32.mrb[0].mxu0
        %447 = vdwg.mxu0
        %448 = vmatprep.subr.mxu0 0.0
        %449 = vmatpush1.msra.mxu0 %v323
        %450 = vmatprep.subr.mxu0 0.0
        %451 = vmatpush1.msra.mxu0 %v324
        %452 = vmatprep.subr.mxu0 0.0
        %453 = vmatpush1.msra.mxu0 %v325
        %454 = vmatprep.subr.mxu0 0.0
        %455 = vmatpush1.msra.mxu0 %v326
        %456 = vmatprep.subr.mxu0 0.0
        %457 = vmatpush1.msra.mxu0 %v327
        %458 = vmatprep.subr.mxu0 0.0
        %459 = vmatpush1.msra.mxu0 %v328
        %460 = vmatprep.subr.mxu0 0.0
        %461 = vmatpush1.msra.mxu0 %v329
        %462 = vmatprep.subr.mxu0 0.0
        %463 = vmatpush1.msra.mxu0 %v330
        %464 = vmatprep.subr.mxu0 0.0
        %465 = vmatpush1.msra.mxu0 %v331
        %466 = vmatprep.subr.mxu0 0.0
        %467 = vmatpush1.msra.mxu0 %v332
        %468 = vmatprep.subr.mxu0 0.0
        %469 = vmatpush1.msra.mxu0 %v333
        %470 = vmatprep.subr.mxu0 0.0
        %471 = vmatpush1.msra.mxu0 %v334
        %472 = vmatprep.subr.mxu0 0.0
        %473 = vmatpush1.msra.mxu0 %v335
        %474 = vmatprep.subr.mxu0 0.0
        %475 = vmatpush1.msra.mxu0 %v336
        %476 = vmatprep.subr.mxu0 0.0
        %477 = vmatpush1.msra.mxu0 %v337
        %478 = vmatprep.subr.mxu0 0.0
        %479 = vmatpush1.msra.mxu0 %v338
        %480 = vmatprep.subr.mxu0 0.0
        %481 = vmatpush1.msra.mxu0 0.0
        %482 = vmatprep.subr.mxu0 0.0
        %483 = vmatpush1.msra.mxu0 0.0
        %484 = vmatprep.subr.mxu0 0.0
        %485 = vmatpush1.msra.mxu0 0.0
        %486 = vmatprep.subr.mxu0 0.0
        %487 = vmatpush1.msra.mxu0 0.0
        %488 = vmatprep.subr.mxu0 0.0
        %489 = vmatpush1.msra.mxu0 0.0
        %490 = vmatprep.subr.mxu0 0.0
        %491 = vmatpush1.msra.mxu0 0.0
        %492 = vmatprep.subr.mxu0 0.0
        %493 = vmatpush1.msra.mxu0 0.0
        %494 = vmatprep.subr.mxu0 0.0
        %495 = vmatpush1.msra.mxu0 0.0
        %496 = vmatprep.subr.mxu0 0.0
        %497 = vmatpush1.msra.mxu0 0.0
        %498 = vmatprep.subr.mxu0 0.0
        %499 = vmatpush1.msra.mxu0 0.0
        %500 = vmatprep.subr.mxu0 0.0
        %501 = vmatpush1.msra.mxu0 0.0
        %502 = vmatprep.subr.mxu0 0.0
        %503 = vmatpush1.msra.mxu0 0.0
        %504 = vmatprep.subr.mxu0 0.0
        %505 = vmatpush1.msra.mxu0 0.0
        %506 = vmatprep.subr.mxu0 0.0
        %507 = vmatpush1.msra.mxu0 0.0
        %508 = vmatprep.subr.mxu0 0.0
        %509 = vmatpush1.msra.mxu0 0.0
        %510 = vmatprep.subr.mxu0 0.0
        %511 = vmatpush1.msra.mxu0 0.0
        %512 = vmatprep.mubr.f32.mxu0 0.0
        %513 = vmatmul.mubr.f32.gmra.mrb[0].mxu0 %v315
        %v514 = vpop.f32.mrb[0].mxu0
        %v515 = vadd.f32 %v441, %v514
        %v516 = vpop.f32.mrb[0].mxu0
        %517 = vmatprep.mubr.f32.mxu0 0.0
        %518 = vmatmul.mubr.f32.gmra.mrb[0].mxu0 %v316
        %v519 = vpop.f32.mrb[0].mxu0
        %v520 = vpop.f32.mrb[0].mxu0
        %521 = vdwg.mxu0
        %522 = vmatprep.subr.mxu0 0.0
        %523 = vmatpush1.msra.mxu0 %v340
        %524 = vmatprep.subr.mxu0 0.0
        %525 = vmatpush1.msra.mxu0 %v341
        %526 = vmatprep.subr.mxu0 0.0
        %527 = vmatpush1.msra.mxu0 %v342
        %528 = vmatprep.subr.mxu0 0.0
        %529 = vmatpush1.msra.mxu0 %v343
        %530 = vmatprep.subr.mxu0 0.0
        %531 = vmatpush1.msra.mxu0 %v344
        %532 = vmatprep.subr.mxu0 0.0
        %533 = vmatpush1.msra.mxu0 %v345
        %534 = vmatprep.subr.mxu0 0.0
        %535 = vmatpush1.msra.mxu0 %v346
        %536 = vmatprep.subr.mxu0 0.0
        %537 = vmatpush1.msra.mxu0 %v347
        %538 = vmatprep.subr.mxu0 0.0
        %539 = vmatpush1.msra.mxu0 %v348
        %540 = vmatprep.subr.mxu0 0.0
        %541 = vmatpush1.msra.mxu0 %v349
        %542 = vmatprep.subr.mxu0 0.0
        %543 = vmatpush1.msra.mxu0 %v350
        %544 = vmatprep.subr.mxu0 0.0
        %545 = vmatpush1.msra.mxu0 %v351
        %546 = vmatprep.subr.mxu0 0.0
        %547 = vmatpush1.msra.mxu0 %v352
        %548 = vmatprep.subr.mxu0 0.0
        %549 = vmatpush1.msra.mxu0 %v353
        %550 = vmatprep.subr.mxu0 0.0
        %551 = vmatpush1.msra.mxu0 %v354
        %552 = vmatprep.subr.mxu0 0.0
        %553 = vmatpush1.msra.mxu0 %v355
        %554 = vmatprep.subr.mxu0 0.0
        %555 = vmatpush1.msra.mxu0 0.0
        %556 = vmatprep.subr.mxu0 0.0
        %557 = vmatpush1.msra.mxu0 0.0
        %558 = vmatprep.subr.mxu0 0.0
        %559 = vmatpush1.msra.mxu0 0.0
        %560 = vmatprep.subr.mxu0 0.0
        %561 = vmatpush1.msra.mxu0 0.0
        %562 = vmatprep.subr.mxu0 0.0
        %563 = vmatpush1.msra.mxu0 0.0
        %564 = vmatprep.subr.mxu0 0.0
        %565 = vmatpush1.msra.mxu0 0.0
        %566 = vmatprep.subr.mxu0 0.0
        %567 = vmatpush1.msra.mxu0 0.0
        %568 = vmatprep.subr.mxu0 0.0
        %569 = vmatpush1.msra.mxu0 0.0
        %570 = vmatprep.subr.mxu0 0.0
        %571 = vmatpush1.msra.mxu0 0.0
        %572 = vmatprep.subr.mxu0 0.0
        %573 = vmatpush1.msra.mxu0 0.0
        %574 = vmatprep.subr.mxu0 0.0
        %575 = vmatpush1.msra.mxu0 0.0
        %576 = vmatprep.subr.mxu0 0.0
        %577 = vmatpush1.msra.mxu0 0.0
        %578 = vmatprep.subr.mxu0 0.0
        %579 = vmatpush1.msra.mxu0 0.0
        %580 = vmatprep.subr.mxu0 0.0
        %581 = vmatpush1.msra.mxu0 0.0
        %582 = vmatprep.subr.mxu0 0.0
        %583 = vmatpush1.msra.mxu0 0.0
        %584 = vmatprep.subr.mxu0 0.0
        %585 = vmatpush1.msra.mxu0 0.0
        %586 = vmatprep.mubr.f32.mxu0 0.0
        %587 = vmatmul.mubr.f32.gmra.mrb[0].mxu0 %v321
        %v588 = vpop.f32.mrb[0].mxu0
        %v589 = vadd.f32 0.0, %v588
        %v590 = vpop.f32.mrb[0].mxu0
        %591 = vdwg.mxu0
        %592 = vmatprep.subr.mxu0 0.0
        %593 = vmatpush1.msra.mxu0 %v323
        %594 = vmatprep.subr.mxu0 0.0
        %595 = vmatpush1.msra.mxu0 %v324
        %596 = vmatprep.subr.mxu0 0.0
        %597 = vmatpush1.msra.mxu0 %v325
        %598 = vmatprep.subr.mxu0 0.0
        %599 = vmatpush1.msra.mxu0 %v326
        %600 = vmatprep.subr.mxu0 0.0
        %601 = vmatpush1.msra.mxu0 %v327
        %602 = vmatprep.subr.mxu0 0.0
        %603 = vmatpush1.msra.mxu0 %v328
        %604 = vmatprep.subr.mxu0 0.0
        %605 = vmatpush1.msra.mxu0 %v329
        %606 = vmatprep.subr.mxu0 0.0
        %607 = vmatpush1.msra.mxu0 %v330
        %608 = vmatprep.subr.mxu0 0.0
        %609 = vmatpush1.msra.mxu0 %v331
        %610 = vmatprep.subr.mxu0 0.0
        %611 = vmatpush1.msra.mxu0 %v332
        %612 = vmatprep.subr.mxu0 0.0
        %613 = vmatpush1.msra.mxu0 %v333
        %614 = vmatprep.subr.mxu0 0.0
        %615 = vmatpush1.msra.mxu0 %v334
        %616 = vmatprep.subr.mxu0 0.0
        %617 = vmatpush1.msra.mxu0 %v335
        %618 = vmatprep.subr.mxu0 0.0
        %619 = vmatpush1.msra.mxu0 %v336
        %620 = vmatprep.subr.mxu0 0.0
        %621 = vmatpush1.msra.mxu0 %v337
        %622 = vmatprep.subr.mxu0 0.0
        %623 = vmatpush1.msra.mxu0 %v338
        %624 = vmatprep.subr.mxu0 0.0
        %625 = vmatpush1.msra.mxu0 0.0
        %626 = vmatprep.subr.mxu0 0.0
        %627 = vmatpush1.msra.mxu0 0.0
        %628 = vmatprep.subr.mxu0 0.0
        %629 = vmatpush1.msra.mxu0 0.0
        %630 = vmatprep.subr.mxu0 0.0
        %631 = vmatpush1.msra.mxu0 0.0
        %632 = vmatprep.subr.mxu0 0.0
        %633 = vmatpush1.msra.mxu0 0.0
        %634 = vmatprep.subr.mxu0 0.0
        %635 = vmatpush1.msra.mxu0 0.0
        %636 = vmatprep.subr.mxu0 0.0
        %637 = vmatpush1.msra.mxu0 0.0
        %638 = vmatprep.subr.mxu0 0.0
        %639 = vmatpush1.msra.mxu0 0.0
        %640 = vmatprep.subr.mxu0 0.0
        %641 = vmatpush1.msra.mxu0 0.0
        %642 = vmatprep.subr.mxu0 0.0
        %643 = vmatpush1.msra.mxu0 0.0
        %644 = vmatprep.subr.mxu0 0.0
        %645 = vmatpush1.msra.mxu0 0.0
        %646 = vmatprep.subr.mxu0 0.0
        %647 = vmatpush1.msra.mxu0 0.0
        %648 = vmatprep.subr.mxu0 0.0
        %649 = vmatpush1.msra.mxu0 0.0
        %650 = vmatprep.subr.mxu0 0.0
        %651 = vmatpush1.msra.mxu0 0.0
        %652 = vmatprep.subr.mxu0 0.0
        %653 = vmatpush1.msra.mxu0 0.0
        %654 = vmatprep.subr.mxu0 0.0
        %655 = vmatpush1.msra.mxu0 0.0
        %656 = vmatprep.mubr.f32.mxu0 0.0
        %657 = vmatmul.mubr.f32.gmra.mrb[0].mxu0 %v319
        %v658 = vpop.f32.mrb[0].mxu0
        %v659 = vadd.f32 %v589, %v658
        %v660 = vpop.f32.mrb[0].mxu0
        %661 = vdwg.mxu0
        %662 = vmatprep.subr.mxu0 0.0
        %663 = vmatpush1.msra.mxu0 %v357
        %664 = vmatprep.subr.mxu0 0.0
        %665 = vmatpush1.msra.mxu0 %v358
        %666 = vmatprep.subr.mxu0 0.0
        %667 = vmatpush1.msra.mxu0 %v359
        %668 = vmatprep.subr.mxu0 0.0
        %669 = vmatpush1.msra.mxu0 %v360
        %670 = vmatprep.subr.mxu0 0.0
        %671 = vmatpush1.msra.mxu0 %v361
        %672 = vmatprep.subr.mxu0 0.0
        %673 = vmatpush1.msra.mxu0 %v362
        %674 = vmatprep.subr.mxu0 0.0
        %675 = vmatpush1.msra.mxu0 %v363
        %676 = vmatprep.subr.mxu0 0.0
        %677 = vmatpush1.msra.mxu0 %v364
        %678 = vmatprep.subr.mxu0 0.0
        %679 = vmatpush1.msra.mxu0 %v365
        %680 = vmatprep.subr.mxu0 0.0
        %681 = vmatpush1.msra.mxu0 %v366
        %682 = vmatprep.subr.mxu0 0.0
        %683 = vmatpush1.msra.mxu0 %v367
        %684 = vmatprep.subr.mxu0 0.0
        %685 = vmatpush1.msra.mxu0 %v368
        %686 = vmatprep.subr.mxu0 0.0
        %687 = vmatpush1.msra.mxu0 %v369
        %688 = vmatprep.subr.mxu0 0.0
        %689 = vmatpush1.msra.mxu0 %v370
        %690 = vmatprep.subr.mxu0 0.0
        %691 = vmatpush1.msra.mxu0 %v371
        %692 = vmatprep.subr.mxu0 0.0
        %693 = vmatpush1.msra.mxu0 %v372
        %694 = vmatprep.subr.mxu0 0.0
        %695 = vmatpush1.msra.mxu0 0.0
        %696 = vmatprep.subr.mxu0 0.0
        %697 = vmatpush1.msra.mxu0 0.0
        %698 = vmatprep.subr.mxu0 0.0
        %699 = vmatpush1.msra.mxu0 0.0
        %700 = vmatprep.subr.mxu0 0.0
        %701 = vmatpush1.msra.mxu0 0.0
        %702 = vmatprep.subr.mxu0 0.0
        %703 = vmatpush1.msra.mxu0 0.0
        %704 = vmatprep.subr.mxu0 0.0
        %705 = vmatpush1.msra.mxu0 0.0
        %706 = vmatprep.subr.mxu0 0.0
        %707 = vmatpush1.msra.mxu0 0.0
        %708 = vmatprep.subr.mxu0 0.0
        %709 = vmatpush1.msra.mxu0 0.0
        %710 = vmatprep.subr.mxu0 0.0
        %711 = vmatpush1.msra.mxu0 0.0
        %712 = vmatprep.subr.mxu0 0.0
        %713 = vmatpush1.msra.mxu0 0.0
        %714 = vmatprep.subr.mxu0 0.0
        %715 = vmatpush1.msra.mxu0 0.0
        %716 = vmatprep.subr.mxu0 0.0
        %717 = vmatpush1.msra.mxu0 0.0
        %718 = vmatprep.subr.mxu0 0.0
        %719 = vmatpush1.msra.mxu0 0.0
        %720 = vmatprep.subr.mxu0 0.0
        %721 = vmatpush1.msra.mxu0 0.0
        %722 = vmatprep.subr.mxu0 0.0
        %723 = vmatpush1.msra.mxu0 0.0
        %724 = vmatprep.subr.mxu0 0.0
        %725 = vmatpush1.msra.mxu0 0.0
        %726 = vmatprep.mubr.f32.mxu0 0.0
        %727 = vmatmul.mubr.f32.gmra.mrb[0].mxu0 %v319
        %v728 = vpop.f32.mrb[0].mxu0
        %v729 = vadd.f32 0.0, %v728
        %v730 = vpop.f32.mrb[0].mxu0
        %731 = vmatprep.mubr.f32.mxu0 0.0
        %732 = vmatmul.mubr.f32.gmra.mrb[0].mxu0 %v320
        %v733 = vpop.f32.mrb[0].mxu0
        %v734 = vpop.f32.mrb[0].mxu0
        %735 = vdwg.mxu0
        %v736 = vadd.f32 %v515, %v729
        %737 = vmatprep.subr.mxu0 0.0
        %738 = vmatpush1.msra.mxu0 %v357
        %739 = vmatprep.subr.mxu0 0.0
        %740 = vmatpush1.msra.mxu0 %v358
        %741 = vmatprep.subr.mxu0 0.0
        %742 = vmatpush1.msra.mxu0 %v359
        %743 = vmatprep.subr.mxu0 0.0
        %744 = vmatpush1.msra.mxu0 %v360
        %745 = vmatprep.subr.mxu0 0.0
        %746 = vmatpush1.msra.mxu0 %v361
        %747 = vmatprep.subr.mxu0 0.0
        %748 = vmatpush1.msra.mxu0 %v362
        %749 = vmatprep.subr.mxu0 0.0
        %750 = vmatpush1.msra.mxu0 %v363
        %751 = vmatprep.subr.mxu0 0.0
        %752 = vmatpush1.msra.mxu0 %v364
        %753 = vmatprep.subr.mxu0 0.0
        %754 = vmatpush1.msra.mxu0 %v365
        %755 = vmatprep.subr.mxu0 0.0
        %756 = vmatpush1.msra.mxu0 %v366
        %757 = vmatprep.subr.mxu0 0.0
        %758 = vmatpush1.msra.mxu0 %v367
        %759 = vmatprep.subr.mxu0 0.0
        %760 = vmatpush1.msra.mxu0 %v368
        %761 = vmatprep.subr.mxu0 0.0
        %762 = vmatpush1.msra.mxu0 %v369
        %763 = vmatprep.subr.mxu0 0.0
        %764 = vmatpush1.msra.mxu0 %v370
        %765 = vmatprep.subr.mxu0 0.0
        %766 = vmatpush1.msra.mxu0 %v371
        %767 = vmatprep.subr.mxu0 0.0
        %768 = vmatpush1.msra.mxu0 %v372
        %769 = vmatprep.subr.mxu0 0.0
        %770 = vmatpush1.msra.mxu0 0.0
        %771 = vmatprep.subr.mxu0 0.0
        %772 = vmatpush1.msra.mxu0 0.0
        %773 = vmatprep.subr.mxu0 0.0
        %774 = vmatpush1.msra.mxu0 0.0
        %775 = vmatprep.subr.mxu0 0.0
        %776 = vmatpush1.msra.mxu0 0.0
        %777 = vmatprep.subr.mxu0 0.0
        %778 = vmatpush1.msra.mxu0 0.0
        %779 = vmatprep.subr.mxu0 0.0
        %780 = vmatpush1.msra.mxu0 0.0
        %781 = vmatprep.subr.mxu0 0.0
        %782 = vmatpush1.msra.mxu0 0.0
        %783 = vmatprep.subr.mxu0 0.0
        %784 = vmatpush1.msra.mxu0 0.0
        %785 = vmatprep.subr.mxu0 0.0
        %786 = vmatpush1.msra.mxu0 0.0
        %787 = vmatprep.subr.mxu0 0.0
        %788 = vmatpush1.msra.mxu0 0.0
        %789 = vmatprep.subr.mxu0 0.0
        %790 = vmatpush1.msra.mxu0 0.0
        %791 = vmatprep.subr.mxu0 0.0
        %792 = vmatpush1.msra.mxu0 0.0
        %793 = vmatprep.subr.mxu0 0.0
        %794 = vmatpush1.msra.mxu0 0.0
        %795 = vmatprep.subr.mxu0 0.0
        %796 = vmatpush1.msra.mxu0 0.0
        %797 = vmatprep.subr.mxu0 0.0
        %798 = vmatpush1.msra.mxu0 0.0
        %799 = vmatprep.subr.mxu0 0.0
        %800 = vmatpush1.msra.mxu0 0.0
        %801 = vmatprep.mubr.f32.mxu0 0.0
        %802 = vmatmul.mubr.f32.gmra.mrb[0].mxu0 %v322
        %v803 = vpop.f32.mrb[0].mxu0
        %v804 = vadd.f32 0.0, %v803
        %v805 = vpop.f32.mrb[0].mxu0
        %806 = vdwg.mxu0
        %v807 = vadd.f32 %v659, %v804
        %v809 = vlaneseq
        %v810 = vshrl.u32 %v809, 7
        %v811 = vsub.s32 0, %v810
        %v812 = vrot.slane %v373, %v811
        %v814 = vadd.f32 %v736, %v812
        %vm815 = vcmp.gt.f32.partialorder %v814, 0.0
        %v816 = vmul.f32 %v814, 0.01
        %v817 = vsel %vm815, %v814, %v816
        %v818 = vadd.f32 %v807, %v812
        %vm819 = vcmp.gt.f32.partialorder %v818, 0.0
        %v820 = vmul.f32 %v818, 0.01
        %v821 = vsel %vm819, %v818, %v820
        %v822 = vlaneseq
        %v823 = vshrl.u32 %v822, 7
        %s824 = smul.u32 %s29, 2
        %v825 = vstv %s824
        %v826 = vadd.s32 %v825, %v823
        %v827 = vmul.u32 %v826, 2
        %v828 = vsub.s32 %v827, 1
        %vm829 = vcmp.ge.s32.totalorder %v828, 0
        %vm830 = vcmp.lt.s32.totalorder %v828, 4
        %vm831 = vmand %vm829, %vm830
        %v832 = vsel %vm831, 1, 0
        %vm833 = vcmp.eq.s32.totalorder %v832, 1
        %v834 = vsel %vm833, %v817, 0.0
        %v835 = vld [vmem:[#allocation8] sm:$0xff]
        %v836 = vld [vmem:[#allocation8 + $0x8] sm:$0xff]
        %v837 = vld [vmem:[#allocation8 + $0x10] sm:$0xff]
        %v838 = vld [vmem:[#allocation8 + $0x18] sm:$0xff]
        %v839 = vld [vmem:[#allocation8 + $0x20] sm:$0xff]
        %v840 = vld [vmem:[#allocation8 + $0x28] sm:$0xff]
        %v841 = vld [vmem:[#allocation8 + $0x30] sm:$0xff]
        %v842 = vld [vmem:[#allocation8 + $0x38] sm:$0xff]
        %v843 = vld [vmem:[#allocation8 + $0x40] sm:$0xff]
        %v844 = vld [vmem:[#allocation8 + $0x48] sm:$0xff]
        %v845 = vld [vmem:[#allocation8 + $0x50] sm:$0xff]
        %v846 = vld [vmem:[#allocation8 + $0x58] sm:$0xff]
        %v847 = vld [vmem:[#allocation8 + $0x60] sm:$0xff]
        %v848 = vld [vmem:[#allocation8 + $0x68] sm:$0xff]
        %v849 = vld [vmem:[#allocation8 + $0x70] sm:$0xff]
        %v850 = vld [vmem:[#allocation8 + $0x78] sm:$0xff]
        %s851 = scalar_lea.vmem [#allocation8], 128
        %v852 = vld [vmem:[%s851] sm:$0xff]
        %v853 = vld [vmem:[%s851 + $0x8] sm:$0xff]
        %v854 = vld [vmem:[%s851 + $0x10] sm:$0xff]
        %v855 = vld [vmem:[%s851 + $0x18] sm:$0xff]
        %v856 = vld [vmem:[%s851 + $0x20] sm:$0xff]
        %v857 = vld [vmem:[%s851 + $0x28] sm:$0xff]
        %v858 = vld [vmem:[%s851 + $0x30] sm:$0xff]
        %v859 = vld [vmem:[%s851 + $0x38] sm:$0xff]
        %v860 = vld [vmem:[%s851 + $0x40] sm:$0xff]
        %v861 = vld [vmem:[%s851 + $0x48] sm:$0xff]
        %v862 = vld [vmem:[%s851 + $0x50] sm:$0xff]
        %v863 = vld [vmem:[%s851 + $0x58] sm:$0xff]
        %v864 = vld [vmem:[%s851 + $0x60] sm:$0xff]
        %v865 = vld [vmem:[%s851 + $0x68] sm:$0xff]
        %v866 = vld [vmem:[%s851 + $0x70] sm:$0xff]
        %v867 = vld [vmem:[%s851 + $0x78] sm:$0xff]
        %868 = vmatprep.subr.mxu0 0.0
        %869 = vmatpush1.msra.mxu0 %v852
        %870 = vmatprep.subr.mxu0 0.0
        %871 = vmatpush1.msra.mxu0 %v853
        %872 = vmatprep.subr.mxu0 0.0
        %873 = vmatpush1.msra.mxu0 %v854
        %874 = vmatprep.subr.mxu0 0.0
        %875 = vmatpush1.msra.mxu0 %v855
        %876 = vmatprep.subr.mxu0 0.0
        %877 = vmatpush1.msra.mxu0 %v856
        %878 = vmatprep.subr.mxu0 0.0
        %879 = vmatpush1.msra.mxu0 %v857
        %880 = vmatprep.subr.mxu0 0.0
        %881 = vmatpush1.msra.mxu0 %v858
        %882 = vmatprep.subr.mxu0 0.0
        %883 = vmatpush1.msra.mxu0 %v859
        %884 = vmatprep.subr.mxu0 0.0
        %885 = vmatpush1.msra.mxu0 %v860
        %886 = vmatprep.subr.mxu0 0.0
        %887 = vmatpush1.msra.mxu0 %v861
        %888 = vmatprep.subr.mxu0 0.0
        %889 = vmatpush1.msra.mxu0 %v862
        %890 = vmatprep.subr.mxu0 0.0
        %891 = vmatpush1.msra.mxu0 %v863
        %892 = vmatprep.subr.mxu0 0.0
        %893 = vmatpush1.msra.mxu0 %v864
        %894 = vmatprep.subr.mxu0 0.0
        %895 = vmatpush1.msra.mxu0 %v865
        %896 = vmatprep.subr.mxu0 0.0
        %897 = vmatpush1.msra.mxu0 %v866
        %898 = vmatprep.subr.mxu0 0.0
        %899 = vmatpush1.msra.mxu0 %v867
        %900 = vmatprep.subr.mxu0 0.0
        %901 = vmatpush1.msra.mxu0 0.0
        %902 = vmatprep.subr.mxu0 0.0
        %903 = vmatpush1.msra.mxu0 0.0
        %904 = vmatprep.subr.mxu0 0.0
        %905 = vmatpush1.msra.mxu0 0.0
        %906 = vmatprep.subr.mxu0 0.0
        %907 = vmatpush1.msra.mxu0 0.0
        %908 = vmatprep.subr.mxu0 0.0
        %909 = vmatpush1.msra.mxu0 0.0
        %910 = vmatprep.subr.mxu0 0.0
        %911 = vmatpush1.msra.mxu0 0.0
        %912 = vmatprep.subr.mxu0 0.0
        %913 = vmatpush1.msra.mxu0 0.0
        %914 = vmatprep.subr.mxu0 0.0
        %915 = vmatpush1.msra.mxu0 0.0
        %916 = vmatprep.subr.mxu0 0.0
        %917 = vmatpush1.msra.mxu0 0.0
        %918 = vmatprep.subr.mxu0 0.0
        %919 = vmatpush1.msra.mxu0 0.0
        %920 = vmatprep.subr.mxu0 0.0
        %921 = vmatpush1.msra.mxu0 0.0
        %922 = vmatprep.subr.mxu0 0.0
        %923 = vmatpush1.msra.mxu0 0.0
        %924 = vmatprep.subr.mxu0 0.0
        %925 = vmatpush1.msra.mxu0 0.0
        %926 = vmatprep.subr.mxu0 0.0
        %927 = vmatpush1.msra.mxu0 0.0
        %928 = vmatprep.subr.mxu0 0.0
        %929 = vmatpush1.msra.mxu0 0.0
        %930 = vmatprep.subr.mxu0 0.0
        %931 = vmatpush1.msra.mxu0 0.0
        %932 = vmatprep.mubr.f32.mxu0 0.0
        %933 = vmatmul.mubr.f32.gmra.mrb[0].mxu0 %v821
        %v934 = vpop.f32.mrb[0].mxu0
        %v935 = vadd.f32 0.0, %v934
        %v936 = vpop.f32.mrb[0].mxu0
        %937 = vdwg.mxu0
        %938 = vmatprep.subr.mxu0 0.0
        %939 = vmatpush1.msra.mxu0 %v835
        %940 = vmatprep.subr.mxu0 0.0
        %941 = vmatpush1.msra.mxu0 %v836
        %942 = vmatprep.subr.mxu0 0.0
        %943 = vmatpush1.msra.mxu0 %v837
        %944 = vmatprep.subr.mxu0 0.0
        %945 = vmatpush1.msra.mxu0 %v838
        %946 = vmatprep.subr.mxu0 0.0
        %947 = vmatpush1.msra.mxu0 %v839
        %948 = vmatprep.subr.mxu0 0.0
        %949 = vmatpush1.msra.mxu0 %v840
        %950 = vmatprep.subr.mxu0 0.0
        %951 = vmatpush1.msra.mxu0 %v841
        %952 = vmatprep.subr.mxu0 0.0
        %953 = vmatpush1.msra.mxu0 %v842
        %954 = vmatprep.subr.mxu0 0.0
        %955 = vmatpush1.msra.mxu0 %v843
        %956 = vmatprep.subr.mxu0 0.0
        %957 = vmatpush1.msra.mxu0 %v844
        %958 = vmatprep.subr.mxu0 0.0
        %959 = vmatpush1.msra.mxu0 %v845
        %960 = vmatprep.subr.mxu0 0.0
        %961 = vmatpush1.msra.mxu0 %v846
        %962 = vmatprep.subr.mxu0 0.0
        %963 = vmatpush1.msra.mxu0 %v847
        %964 = vmatprep.subr.mxu0 0.0
        %965 = vmatpush1.msra.mxu0 %v848
        %966 = vmatprep.subr.mxu0 0.0
        %967 = vmatpush1.msra.mxu0 %v849
        %968 = vmatprep.subr.mxu0 0.0
        %969 = vmatpush1.msra.mxu0 %v850
        %970 = vmatprep.subr.mxu0 0.0
        %971 = vmatpush1.msra.mxu0 0.0
        %972 = vmatprep.subr.mxu0 0.0
        %973 = vmatpush1.msra.mxu0 0.0
        %974 = vmatprep.subr.mxu0 0.0
        %975 = vmatpush1.msra.mxu0 0.0
        %976 = vmatprep.subr.mxu0 0.0
        %977 = vmatpush1.msra.mxu0 0.0
        %978 = vmatprep.subr.mxu0 0.0
        %979 = vmatpush1.msra.mxu0 0.0
        %980 = vmatprep.subr.mxu0 0.0
        %981 = vmatpush1.msra.mxu0 0.0
        %982 = vmatprep.subr.mxu0 0.0
        %983 = vmatpush1.msra.mxu0 0.0
        %984 = vmatprep.subr.mxu0 0.0
        %985 = vmatpush1.msra.mxu0 0.0
        %986 = vmatprep.subr.mxu0 0.0
        %987 = vmatpush1.msra.mxu0 0.0
        %988 = vmatprep.subr.mxu0 0.0
        %989 = vmatpush1.msra.mxu0 0.0
        %990 = vmatprep.subr.mxu0 0.0
        %991 = vmatpush1.msra.mxu0 0.0
        %992 = vmatprep.subr.mxu0 0.0
        %993 = vmatpush1.msra.mxu0 0.0
        %994 = vmatprep.subr.mxu0 0.0
        %995 = vmatpush1.msra.mxu0 0.0
        %996 = vmatprep.subr.mxu0 0.0
        %997 = vmatpush1.msra.mxu0 0.0
        %998 = vmatprep.subr.mxu0 0.0
        %999 = vmatpush1.msra.mxu0 0.0
        %1000 = vmatprep.subr.mxu0 0.0
        %1001 = vmatpush1.msra.mxu0 0.0
        %1002 = vmatprep.mubr.f32.mxu0 0.0
        %1003 = vmatmul.mubr.f32.gmra.mrb[0].mxu0 %v834
        %v1004 = vpop.f32.mrb[0].mxu0
        %v1005 = vadd.f32 %v935, %v1004
        %v1006 = vpop.f32.mrb[0].mxu0
        %1007 = vdwg.mxu0
        %s1008 = scalar_lea.vmem [#allocation8], 256
        %v1009 = vld [vmem:[%s1008] sm:$0xff]
        %v1010 = vld [vmem:[%s1008 + $0x8] sm:$0xff]
        %v1011 = vld [vmem:[%s1008 + $0x10] sm:$0xff]
        %v1012 = vld [vmem:[%s1008 + $0x18] sm:$0xff]
        %v1013 = vld [vmem:[%s1008 + $0x20] sm:$0xff]
        %v1014 = vld [vmem:[%s1008 + $0x28] sm:$0xff]
        %v1015 = vld [vmem:[%s1008 + $0x30] sm:$0xff]
        %v1016 = vld [vmem:[%s1008 + $0x38] sm:$0xff]
        %v1017 = vld [vmem:[%s1008 + $0x40] sm:$0xff]
        %v1018 = vld [vmem:[%s1008 + $0x48] sm:$0xff]
        %v1019 = vld [vmem:[%s1008 + $0x50] sm:$0xff]
        %v1020 = vld [vmem:[%s1008 + $0x58] sm:$0xff]
        %v1021 = vld [vmem:[%s1008 + $0x60] sm:$0xff]
        %v1022 = vld [vmem:[%s1008 + $0x68] sm:$0xff]
        %v1023 = vld [vmem:[%s1008 + $0x70] sm:$0xff]
        %v1024 = vld [vmem:[%s1008 + $0x78] sm:$0xff]
        %v1026 = vrot.slane %v834, 1
        %1028 = vmatprep.subr.mxu0 0.0
        %1029 = vmatpush1.msra.mxu0 %v1009
        %1030 = vmatprep.subr.mxu0 0.0
        %1031 = vmatpush1.msra.mxu0 %v1010
        %1032 = vmatprep.subr.mxu0 0.0
        %1033 = vmatpush1.msra.mxu0 %v1011
        %1034 = vmatprep.subr.mxu0 0.0
        %1035 = vmatpush1.msra.mxu0 %v1012
        %1036 = vmatprep.subr.mxu0 0.0
        %1037 = vmatpush1.msra.mxu0 %v1013
        %1038 = vmatprep.subr.mxu0 0.0
        %1039 = vmatpush1.msra.mxu0 %v1014
        %1040 = vmatprep.subr.mxu0 0.0
        %1041 = vmatpush1.msra.mxu0 %v1015
        %1042 = vmatprep.subr.mxu0 0.0
        %1043 = vmatpush1.msra.mxu0 %v1016
        %1044 = vmatprep.subr.mxu0 0.0
        %1045 = vmatpush1.msra.mxu0 %v1017
        %1046 = vmatprep.subr.mxu0 0.0
        %1047 = vmatpush1.msra.mxu0 %v1018
        %1048 = vmatprep.subr.mxu0 0.0
        %1049 = vmatpush1.msra.mxu0 %v1019
        %1050 = vmatprep.subr.mxu0 0.0
        %1051 = vmatpush1.msra.mxu0 %v1020
        %1052 = vmatprep.subr.mxu0 0.0
        %1053 = vmatpush1.msra.mxu0 %v1021
        %1054 = vmatprep.subr.mxu0 0.0
        %1055 = vmatpush1.msra.mxu0 %v1022
        %1056 = vmatprep.subr.mxu0 0.0
        %1057 = vmatpush1.msra.mxu0 %v1023
        %1058 = vmatprep.subr.mxu0 0.0
        %1059 = vmatpush1.msra.mxu0 %v1024
        %1060 = vmatprep.subr.mxu0 0.0
        %1061 = vmatpush1.msra.mxu0 0.0
        %1062 = vmatprep.subr.mxu0 0.0
        %1063 = vmatpush1.msra.mxu0 0.0
        %1064 = vmatprep.subr.mxu0 0.0
        %1065 = vmatpush1.msra.mxu0 0.0
        %1066 = vmatprep.subr.mxu0 0.0
        %1067 = vmatpush1.msra.mxu0 0.0
        %1068 = vmatprep.subr.mxu0 0.0
        %1069 = vmatpush1.msra.mxu0 0.0
        %1070 = vmatprep.subr.mxu0 0.0
        %1071 = vmatpush1.msra.mxu0 0.0
        %1072 = vmatprep.subr.mxu0 0.0
        %1073 = vmatpush1.msra.mxu0 0.0
        %1074 = vmatprep.subr.mxu0 0.0
        %1075 = vmatpush1.msra.mxu0 0.0
        %1076 = vmatprep.subr.mxu0 0.0
        %1077 = vmatpush1.msra.mxu0 0.0
        %1078 = vmatprep.subr.mxu0 0.0
        %1079 = vmatpush1.msra.mxu0 0.0
        %1080 = vmatprep.subr.mxu0 0.0
        %1081 = vmatpush1.msra.mxu0 0.0
        %1082 = vmatprep.subr.mxu0 0.0
        %1083 = vmatpush1.msra.mxu0 0.0
        %1084 = vmatprep.subr.mxu0 0.0
        %1085 = vmatpush1.msra.mxu0 0.0
        %1086 = vmatprep.subr.mxu0 0.0
        %1087 = vmatpush1.msra.mxu0 0.0
        %1088 = vmatprep.subr.mxu0 0.0
        %1089 = vmatpush1.msra.mxu0 0.0
        %1090 = vmatprep.subr.mxu0 0.0
        %1091 = vmatpush1.msra.mxu0 0.0
        %1092 = vmatprep.mubr.f32.mxu0 0.0
        %1093 = vmatmul.mubr.f32.gmra.mrb[0].mxu0 %v1026
        %v1094 = vpop.f32.mrb[0].mxu0
        %v1095 = vadd.f32 0.0, %v1094
        %v1096 = vpop.f32.mrb[0].mxu0
        %1097 = vdwg.mxu0
        %v1098 = vadd.f32 %v1005, %v1095
        %v1099 = vld [vmem:[#allocation10] sm:$0x1]
        %v1101 = vlaneseq
        %v1102 = vshrl.u32 %v1101, 7
        %v1103 = vsub.s32 0, %v1102
        %v1104 = vrot.slane %v1099, %v1103
        %v1106 = vadd.f32 %v1098, %v1104
        %vm1107 = vcmp.gt.f32.partialorder %v1106, 0.0
        %v1108 = vmul.f32 %v1106, 0.01
        %v1109 = vsel %vm1107, %v1106, %v1108
        %1110 = vst [vmem:[%s314] sm:$0x3] %v1109
        %s1111 = sand.u32 %s158, 1
        %s1112 = scalar_lea.sflag [#allocation4], %s1111
        %s1113 = sand.u32 %s158, 1
        %s1114 = smul.addr %s1113, 2
        %s1115 = scalar_lea.vmem [#allocation11], %s1114
        // Predicated region
        $region61: #{tpu_custom_call.1} parent=39 // pred_check
          %p1116 = pneg %p168
        $region62: #{tpu_custom_call.1} parent=39 // pred_check_branch
          %1118 = sbr.rel (%p1116) target = $region64
        $region63: #{tpu_custom_call.1} parent=39 // pred_region
          %s1120 = ssub.s32 32, 32
          %1121 = vsyncadd %s1112, %s1120
          %s1122 = sadd.s32 %s29, %s28
          %s1123 = smul.addr %s1122, 32
          %s1124 = scalar_lea.hbm %s5, %s1123
          %s1126 = sshll.u32 %s1115, 4
          %s1127 = int_to_ptr.vmem [resolvable:$true] %s1126
          %1129 = dma.vmem_to_hbm [thread:$0]  %s1127, 32, %s1124, %s1112
        $region64: #{tpu_custom_call.1} parent=39 // pred_fallthru
          _
      $region40: #{tpu_custom_call.1} parent=5 // pred_fallthru
        _
      %p1130 = scmp.le.s32.totalorder 2, %s19
      // Predicated region
      $region65: #{tpu_custom_call.1} parent=5 // pred_check
        %p1131 = pneg %p1130
      $region66: #{tpu_custom_call.1} parent=5 // pred_check_branch
        %1133 = sbr.rel (%p1131) target = $region68
      $region67: #{tpu_custom_call.1} parent=5 // pred_region
        %s1134 = ssub.s32 %s19, 2
        // Predicated region
        $region69: #{tpu_custom_call.1} parent=67 // pred_check
          %p1135 = pneg %p174
        $region70: #{tpu_custom_call.1} parent=67 // pred_check_branch
          %1137 = sbr.rel (%p1135) target = $region72
        $region71: #{tpu_custom_call.1} parent=67 // pred_region
          %s1138 = sand.u32 %s159, 1
          %s1139 = scalar_lea.sflag [#allocation4], %s1138
          %s1140 = sand.u32 %s159, 1
          %s1141 = smul.addr %s1140, 2
          %s1142 = scalar_lea.vmem [#allocation11], %s1141
          %1143 = dma.done %s1139, 32
        $region72: #{tpu_custom_call.1} parent=67 // pred_fallthru
          _
      $region68: #{tpu_custom_call.1} parent=5 // pred_fallthru
        _
    $region6: #{tpu_custom_call.1} parent=1 // loop_footer
      %s23 = sadd.s32 1, %s19
    $region7: #{tpu_custom_call.1} parent=1 // loop_footer_branch
      %18 = sbr.rel target = $region3
    $region8: #{tpu_custom_call.1} parent=1 // loop_exit
      _
    %1144 = vsyncpa [#allocation3], 1
    %s1145 = scalar_lea.sflag [#allocation3], 1
    %1146 = vsyncpa %s1145, 1
    %1147 = vsyncpa [#allocation6], 1
    %1148 = vsyncpa [#allocation9], 1
    %1149 = vsyncpa [#allocation4], 1
    %s1150 = scalar_lea.sflag [#allocation4], 1
    %1151 = vsyncpa %s1150, 1

</llo_original>
